<compile_context>
chip_gen: v7x
topology: tpu7x:2x2x1
jax: 0.10.0
libtpu: 0.0.40
codegen_flags: <defaults>
</compile_context>

<pallas_src>
import functools

import jax
import jax.numpy as jnp
from jax import lax
from jax.experimental import pallas as pl
from jax.experimental.pallas import tpu as pltpu


def _adconv_kernel(x_ref, w_ref, col_ref, b_ref, o_ref, acc_ref, *,
                   H, W, oc, k, d, cc, rc, Ho, Wo):
    """One batch element: fused (vertical conv + horizontal conv + folded BN)."""
    HW = H * W
    HoW = Ho * W                     # accumulator keeps the full W columns per row
    x = x_ref[0]                     # (C, H*W) flat spatial slab, loaded once

    acc_ref[...] = jnp.zeros_like(acc_ref)

    for t in range(k):               # static unroll over the k taps of both 1-D convs
        # One MXU matmul mixes channels for BOTH branches of tap t: (2*oc, C) @ (C, H*W)
        wt = w_ref[t * 2 * oc:(t + 1) * 2 * oc, :]
        mix = jnp.dot(wt, x, preferred_element_type=jnp.float32)    # (2*oc, H*W)

        # ---- vertical conv tap t: pure row shift by (t*d - d) rows -------------
        off = (t * d - d) * W
        lo = max(0, -off)
        hi = min(HoW, HW - off)
        if lo < hi:
            acc_ref[:, lo:hi] += mix[:oc, lo + off:hi + off]

        # ---- horizontal conv tap t: column shift by (t*d - d), row offset rc ---
        sh = t * d - d - cc          # shift relative to accumulator columns
        soff = rc * W + sh
        lo = max(0, -soff)
        hi = min(HoW, HW - soff)
        if lo < hi:
            contrib = mix[oc:, lo + soff:hi + soff]
            if sh != 0:
                # zero positions whose source column lies in the conv's zero padding
                cw = col_ref[:, lo:hi] + sh
                contrib = jnp.where((cw >= 0) & (cw < W), contrib, 0.0)
            acc_ref[:, lo:hi] += contrib

    # Epilogue: add the folded BatchNorm bias and emit the output.
    if cc == 0:
        # Lane-dense single store: output width == W, flat last dim Ho*W.
        o_ref[0] = (acc_ref[...] + b_ref[...]).astype(o_ref.dtype)
    else:
        # Column crop fused here: write the Wo valid columns of each output row.
        for i in range(Ho):
            o_ref[0, :, i * Wo:(i + 1) * Wo] = (
                acc_ref[:, i * W + cc:i * W + cc + Wo] + b_ref[...]
            ).astype(o_ref.dtype)


def asymmetric_dconv(x, w_ver, w_hor, bn_ver, bn_hor, *,
                     padding, stride, dilations, eps=1e-5):
    """Forward pass of Asymmetric_DConv (inference-mode BatchNorm), NCHW layout.

    x      : (N, C, H, W) float32
    w_ver  : (OC, C, k, 1)  vertical conv weight   (PyTorch OIHW)
    w_hor  : (OC, C, 1, k)  horizontal conv weight
    bn_ver / bn_hor : tuples (gamma, beta, running_mean, running_var), each (OC,)
    """
    N, C, H, W = x.shape
    OC, C2, k, one = w_ver.shape
    assert C2 == C and one == 1 and w_hor.shape == (OC, C, 1, k)
    d = int(dilations)
    assert d >= 1
    # TODO(synk): stride > 1 is not implemented in the fused kernel (typical use is 1).
    assert int(stride) == 1, "fused Pallas kernel currently supports stride == 1 only"

    # CropLayer geometry: negative center offset -> symmetric crop instead of pad.
    co = padding - k // 2
    cc = max(0, -co)            # columns cropped each side before the vertical conv
    rc = max(0, -co)            # rows    cropped each side before the horizontal conv

    # Branch output sizes (PyTorch Conv2d formula, stride 1); they must agree.
    Ho_v, Wo_v = H + 2 * d - d * (k - 1), W - 2 * cc
    Ho_h, Wo_h = H - 2 * rc, W + 2 * d - d * (k - 1)
    assert (Ho_v, Wo_v) == (Ho_h, Wo_h), (
        "vertical / horizontal branch shapes differ; invalid (k, padding, dilation)")
    Ho, Wo = Ho_v, Wo_v
    assert Ho > 0 and Wo > 0

    f32 = jnp.float32

    # Fold inference-mode BatchNorm into the conv weights + one per-channel bias.
    # TODO(synk): training-mode BatchNorm (batch statistics) would need an extra
    # reduction pass; running-stats (inference) BN is folded here instead.
    def _fold(bn):
        gamma, beta, mean, var = (jnp.asarray(p, f32) for p in bn)
        scale = gamma * lax.rsqrt(var + eps)
        return scale, beta - mean * scale

    scale_v, shift_v = _fold(bn_ver)
    scale_h, shift_h = _fold(bn_hor)

    wv = w_ver[:, :, :, 0].astype(f32) * scale_v[:, None, None]      # (OC, C, k)
    wh = w_hor[:, :, 0, :].astype(f32) * scale_h[:, None, None]      # (OC, C, k)
    # Per-tap weight slab: rows [t*2OC : t*2OC+OC] = vertical tap t, next OC = horizontal.
    w_taps = jnp.concatenate(
        [jnp.transpose(wv, (2, 0, 1)), jnp.transpose(wh, (2, 0, 1))], axis=1
    ).reshape(2 * k * OC, C)                                         # (2k*OC, C)
    bias = (shift_v + shift_h).reshape(OC, 1)                        # (OC, 1)

    # Column-index pattern of the flat (row-major, width W) accumulator; used to mask
    # horizontal taps whose source column falls into zero padding / cropped border.
    col_idx = (jnp.arange(Ho * W, dtype=jnp.int32) % W).reshape(1, Ho * W)

    x_flat = x.reshape(N, C, H * W)        # free metadata reshape: flat spatial layout

    kernel = functools.partial(
        _adconv_kernel, H=H, W=W, oc=OC, k=k, d=d, cc=cc, rc=rc, Ho=Ho, Wo=Wo)

    flops = 2 * N * k * (2 * OC) * C * H * W
    bytes_accessed = 4 * (N * C * H * W + N * OC * Ho * Wo
                          + w_taps.size + bias.size + col_idx.size)

    out_flat = pl.pallas_call(
        kernel,
        out_shape=jax.ShapeDtypeStruct((N, OC, Ho * Wo), x.dtype),
        grid=(N,),
        in_specs=[
            pl.BlockSpec((1, C, H * W), lambda n: (n, 0, 0)),   # one batch slab per step
            pl.BlockSpec((2 * k * OC, C), lambda n: (0, 0)),    # folded weights (resident)
            pl.BlockSpec((1, Ho * W), lambda n: (0, 0)),        # column pattern (resident)
            pl.BlockSpec((OC, 1), lambda n: (0, 0)),            # folded BN bias (resident)
        ],
        out_specs=pl.BlockSpec((1, OC, Ho * Wo), lambda n: (n, 0, 0)),
        scratch_shapes=[pltpu.VMEM((OC, Ho * W), jnp.float32)],
        compiler_params=pltpu.CompilerParams(
            dimension_semantics=("parallel",)),                 # batch -> both TCs on v7x
        cost_estimate=pl.CostEstimate(
            flops=flops, transcendentals=0, bytes_accessed=bytes_accessed),
    )(x_flat, w_taps, col_idx, bias)

    return out_flat.reshape(N, OC, Ho, Wo)   # free reshape back to NCHW


# ----------------------------- pure-JAX reference ---------------------------------
def _reference(x, w_ver, w_hor, bn_ver, bn_hor, *, padding, stride, dilations, eps=1e-5):
    k = w_ver.shape[2]
    d = dilations
    co = padding - k // 2
    if co < 0:
        xv = x[:, :, :, -co:x.shape[3] + co]     # CropLayer: crop columns (ver path)
        xh = x[:, :, -co:x.shape[2] + co, :]     # CropLayer: crop rows    (hor path)
    else:
        xv, xh = x, x

    def bn(y, params):
        gamma, beta, mean, var = params
        scale = gamma / jnp.sqrt(var + eps)
        shift = beta - mean * scale
        return y * scale[None, :, None, None] + shift[None, :, None, None]

    dn = ("NCHW", "OIHW", "NCHW")
    ver = lax.conv_general_dilated(
        xv, w_ver, window_strides=(stride, stride), padding=((d, d), (0, 0)),
        rhs_dilation=(d, 1), dimension_numbers=dn, precision=lax.Precision.HIGHEST)
    hor = lax.conv_general_dilated(
        xh, w_hor, window_strides=(stride, stride), padding=((0, 0), (d, d)),
        rhs_dilation=(1, d), dimension_numbers=dn, precision=lax.Precision.HIGHEST)
    return bn(ver, bn_ver) + bn(hor, bn_hor)


if __name__ == "__main__":
    key = jax.random.PRNGKey(0)
    keys = jax.random.split(key, 12)
    N, C, OC, H, W = 2, 4, 8, 16, 16

    x = jax.random.normal(keys[0], (N, C, H, W), jnp.float32)

    def make_bn(k1, k2, k3, k4):
        return (1.0 + 0.1 * jax.random.normal(k1, (OC,), jnp.float32),
                0.1 * jax.random.normal(k2, (OC,), jnp.float32),
                0.1 * jax.random.normal(k3, (OC,), jnp.float32),
                jax.random.uniform(k4, (OC,), jnp.float32, 0.5, 1.5))

    bn_v = make_bn(*keys[1:5])
    bn_h = make_bn(*keys[5:9])

    def run_case(kernel_size, padding, dilations, wkey):
        wk1, wk2 = jax.random.split(wkey)
        w_ver = 0.1 * jax.random.normal(wk1, (OC, C, kernel_size, 1), jnp.float32)
        w_hor = 0.1 * jax.random.normal(wk2, (OC, C, 1, kernel_size), jnp.float32)
        out = jax.block_until_ready(
            asymmetric_dconv(x, w_ver, w_hor, bn_v, bn_h,
                             padding=padding, stride=1, dilations=dilations))
        ref = _reference(x, w_ver, w_hor, bn_v, bn_h,
                         padding=padding, stride=1, dilations=dilations)
        assert out.shape == ref.shape, (out.shape, ref.shape)
        err = float(jnp.max(jnp.abs(out - ref)))
        assert jnp.allclose(out, ref, atol=1e-2, rtol=1e-2), (
            f"mismatch k={kernel_size} p={padding} d={dilations}, max err={err}")
        return out

    # 1) crop branch active (padding < k//2): CropLayer fused into the conv taps.
    o1 = run_case(kernel_size=5, padding=1, dilations=1, wkey=keys[9])
    assert o1.shape == (N, OC, 14, 14), o1.shape
    # 2) identity-crop branch (padding == k//2): lane-dense single-store output path.
    o2 = run_case(kernel_size=3, padding=1, dilations=1, wkey=keys[10])
    assert o2.shape == (N, OC, 16, 16), o2.shape
    # 3) dilated taps with identity crop.
    o3 = run_case(kernel_size=3, padding=2, dilations=2, wkey=keys[11])
    assert o3.shape == (N, OC, 16, 16), o3.shape

    print("KERNEL_OK")
</pallas_src>

<mosaic_0001>
module attributes {stable_mosaic.version = 11 : i64} {
  func.func @_adconv_kernel(%arg0: i32, %arg1: memref<1x4x256xf32, #tpu.memory_space<vmem>>, %arg2: memref<80x4xf32, #tpu.memory_space<vmem>>, %arg3: memref<1x224xi32, #tpu.memory_space<vmem>>, %arg4: memref<8x1xf32, #tpu.memory_space<vmem>>, %arg5: memref<1x8x196xf32, #tpu.memory_space<vmem>>, %arg6: memref<8x224xf32, #tpu.memory_space<vmem>>) attributes {dimension_semantics = [#tpu.dimension_semantics<parallel>], iteration_bounds = array<i64: 2>, scalar_prefetch = 0 : i64, scratch_operands = 1 : i64, tpu.core_type = #tpu.core_type<tc>, window_params = [{transform_indices = @transform_0, window_bounds = array<i64: 1, 4, 256>}, {pipeline_mode = #tpu.pipeline_mode<synchronous>, transform_indices = @transform_1, window_bounds = array<i64: 80, 4>}, {pipeline_mode = #tpu.pipeline_mode<synchronous>, transform_indices = @transform_2, window_bounds = array<i64: 1, 224>}, {pipeline_mode = #tpu.pipeline_mode<synchronous>, transform_indices = @transform_3, window_bounds = array<i64: 8, 1>}, {transform_indices = @transform_4, window_bounds = array<i64: 1, 8, 196>}]} {
    %c0 = arith.constant 0 : index
    %c0_0 = arith.constant 0 : index
    %c0_1 = arith.constant 0 : index
    %0 = vector.load %arg1[%c0, %c0_0, %c0_1] : memref<1x4x256xf32, #tpu.memory_space<vmem>>, vector<1x4x256xf32>
    %1 = vector.shape_cast %0 : vector<1x4x256xf32> to vector<4x256xf32>
    %cst = arith.constant 0.000000e+00 : f32
    %2 = vector.broadcast %cst : f32 to vector<8x224xf32>
    %c0_2 = arith.constant 0 : index
    %c0_3 = arith.constant 0 : index
    %3 = vector.load %arg6[%c0_2, %c0_3] : memref<8x224xf32, #tpu.memory_space<vmem>>, vector<8x224xf32>
    tpu.vector_store %arg6[%c0_2, %c0_3], %2 {strides = array<i32>} : memref<8x224xf32, #tpu.memory_space<vmem>>, vector<8x224xf32>,
    %c0_4 = arith.constant 0 : index
    %c0_5 = arith.constant 0 : index
    %4 = vector.load %arg2[%c0_4, %c0_5] : memref<80x4xf32, #tpu.memory_space<vmem>>, vector<16x4xf32>
    %cst_6 = arith.constant dense<0.000000e+00> : vector<16x256xf32>
    %5 = tpu.matmul %4, %1, %cst_6 {dimension_numbers = #tpu.dot_dimension_numbers<[1], [0], [0], [1], [0, 0, 1, 1], [], []>} : vector<16x4xf32>, vector<4x256xf32>, vector<16x256xf32> -> vector<16x256xf32>
    %c0_7 = arith.constant 0 : index
    %c16 = arith.constant 16 : index
    %6 = vector.load %arg6[%c0_7, %c16] : memref<8x224xf32, #tpu.memory_space<vmem>>, vector<8x208xf32>
    %7 = vector.extract_strided_slice %5 {offsets = [0, 0], sizes = [8, 208], strides = [1, 1]} : vector<16x256xf32> to vector<8x208xf32>
    %8 = arith.addf %6, %7 : vector<8x208xf32>
    %c0_8 = arith.constant 0 : index
    %c16_9 = arith.constant 16 : index
    %9 = vector.load %arg6[%c0_8, %c16_9] : memref<8x224xf32, #tpu.memory_space<vmem>>, vector<8x208xf32>
    tpu.vector_store %arg6[%c0_8, %c16_9], %8 {strides = array<i32>} : memref<8x224xf32, #tpu.memory_space<vmem>>, vector<8x208xf32>,
    %10 = vector.extract_strided_slice %5 {offsets = [8, 14], sizes = [8, 224], strides = [1, 1]} : vector<16x256xf32> to vector<8x224xf32>
    %c0_10 = arith.constant 0 : index
    %c0_11 = arith.constant 0 : index
    %11 = vector.load %arg3[%c0_10, %c0_11] : memref<1x224xi32, #tpu.memory_space<vmem>>, vector<1x224xi32>
    %c-2_i32 = arith.constant -2 : i32
    %12 = vector.broadcast %c-2_i32 : i32 to vector<1x224xi32>
    %13 = arith.addi %11, %12 : vector<1x224xi32>
    %c0_i32 = arith.constant 0 : i32
    %14 = vector.broadcast %c0_i32 : i32 to vector<1x224xi32>
    %15 = arith.cmpi sge, %13, %14 : vector<1x224xi32>
    %c16_i32 = arith.constant 16 : i32
    %16 = vector.broadcast %c16_i32 : i32 to vector<1x224xi32>
    %17 = arith.cmpi slt, %13, %16 : vector<1x224xi32>
    %18 = arith.andi %15, %17 : vector<1x224xi1>
    %cst_12 = arith.constant 0.000000e+00 : f32
    %19 = vector.shape_cast %18 : vector<1x224xi1> to vector<1x224xi1>
    %20 = vector.broadcast %19 : vector<1x224xi1> to vector<8x224xi1>
    %21 = vector.broadcast %cst_12 : f32 to vector<8x224xf32>
    %22 = arith.select %20, %10, %21 : vector<8x224xi1>, vector<8x224xf32>
    %c0_13 = arith.constant 0 : index
    %c0_14 = arith.constant 0 : index
    %23 = vector.load %arg6[%c0_13, %c0_14] : memref<8x224xf32, #tpu.memory_space<vmem>>, vector<8x224xf32>
    %24 = arith.addf %23, %22 : vector<8x224xf32>
    %c0_15 = arith.constant 0 : index
    %c0_16 = arith.constant 0 : index
    %25 = vector.load %arg6[%c0_15, %c0_16] : memref<8x224xf32, #tpu.memory_space<vmem>>, vector<8x224xf32>
    tpu.vector_store %arg6[%c0_15, %c0_16], %24 {strides = array<i32>} : memref<8x224xf32, #tpu.memory_space<vmem>>, vector<8x224xf32>,
    %c16_17 = arith.constant 16 : index
    %c0_18 = arith.constant 0 : index
    %26 = vector.load %arg2[%c16_17, %c0_18] : memref<80x4xf32, #tpu.memory_space<vmem>>, vector<16x4xf32>
    %cst_19 = arith.constant dense<0.000000e+00> : vector<16x256xf32>
    %27 = tpu.matmul %26, %1, %cst_19 {dimension_numbers = #tpu.dot_dimension_numbers<[1], [0], [0], [1], [0, 0, 1, 1], [], []>} : vector<16x4xf32>, vector<4x256xf32>, vector<16x256xf32> -> vector<16x256xf32>
    %c0_20 = arith.constant 0 : index
    %c0_21 = arith.constant 0 : index
    %28 = vector.load %arg6[%c0_20, %c0_21] : memref<8x224xf32, #tpu.memory_space<vmem>>, vector<8x224xf32>
    %29 = vector.extract_strided_slice %27 {offsets = [0, 0], sizes = [8, 224], strides = [1, 1]} : vector<16x256xf32> to vector<8x224xf32>
    %30 = arith.addf %28, %29 : vector<8x224xf32>
    %c0_22 = arith.constant 0 : index
    %c0_23 = arith.constant 0 : index
    %31 = vector.load %arg6[%c0_22, %c0_23] : memref<8x224xf32, #tpu.memory_space<vmem>>, vector<8x224xf32>
    tpu.vector_store %arg6[%c0_22, %c0_23], %30 {strides = array<i32>} : memref<8x224xf32, #tpu.memory_space<vmem>>, vector<8x224xf32>,
    %32 = vector.extract_strided_slice %27 {offsets = [8, 15], sizes = [8, 224], strides = [1, 1]} : vector<16x256xf32> to vector<8x224xf32>
    %c0_24 = arith.constant 0 : index
    %c0_25 = arith.constant 0 : index
    %33 = vector.load %arg3[%c0_24, %c0_25] : memref<1x224xi32, #tpu.memory_space<vmem>>, vector<1x224xi32>
    %c-1_i32 = arith.constant -1 : i32
    %34 = vector.broadcast %c-1_i32 : i32 to vector<1x224xi32>
    %35 = arith.addi %33, %34 : vector<1x224xi32>
    %c0_i32_26 = arith.constant 0 : i32
    %36 = vector.broadcast %c0_i32_26 : i32 to vector<1x224xi32>
    %37 = arith.cmpi sge, %35, %36 : vector<1x224xi32>
    %c16_i32_27 = arith.constant 16 : i32
    %38 = vector.broadcast %c16_i32_27 : i32 to vector<1x224xi32>
    %39 = arith.cmpi slt, %35, %38 : vector<1x224xi32>
    %40 = arith.andi %37, %39 : vector<1x224xi1>
    %cst_28 = arith.constant 0.000000e+00 : f32
    %41 = vector.shape_cast %40 : vector<1x224xi1> to vector<1x224xi1>
    %42 = vector.broadcast %41 : vector<1x224xi1> to vector<8x224xi1>
    %43 = vector.broadcast %cst_28 : f32 to vector<8x224xf32>
    %44 = arith.select %42, %32, %43 : vector<8x224xi1>, vector<8x224xf32>
    %c0_29 = arith.constant 0 : index
    %c0_30 = arith.constant 0 : index
    %45 = vector.load %arg6[%c0_29, %c0_30] : memref<8x224xf32, #tpu.memory_space<vmem>>, vector<8x224xf32>
    %46 = arith.addf %45, %44 : vector<8x224xf32>
    %c0_31 = arith.constant 0 : index
    %c0_32 = arith.constant 0 : index
    %47 = vector.load %arg6[%c0_31, %c0_32] : memref<8x224xf32, #tpu.memory_space<vmem>>, vector<8x224xf32>
    tpu.vector_store %arg6[%c0_31, %c0_32], %46 {strides = array<i32>} : memref<8x224xf32, #tpu.memory_space<vmem>>, vector<8x224xf32>,
    %c32 = arith.constant 32 : index
    %c0_33 = arith.constant 0 : index
    %48 = vector.load %arg2[%c32, %c0_33] : memref<80x4xf32, #tpu.memory_space<vmem>>, vector<16x4xf32>
    %cst_34 = arith.constant dense<0.000000e+00> : vector<16x256xf32>
    %49 = tpu.matmul %48, %1, %cst_34 {dimension_numbers = #tpu.dot_dimension_numbers<[1], [0], [0], [1], [0, 0, 1, 1], [], []>} : vector<16x4xf32>, vector<4x256xf32>, vector<16x256xf32> -> vector<16x256xf32>
    %c0_35 = arith.constant 0 : index
    %c0_36 = arith.constant 0 : index
    %50 = vector.load %arg6[%c0_35, %c0_36] : memref<8x224xf32, #tpu.memory_space<vmem>>, vector<8x224xf32>
    %51 = vector.extract_strided_slice %49 {offsets = [0, 16], sizes = [8, 224], strides = [1, 1]} : vector<16x256xf32> to vector<8x224xf32>
    %52 = arith.addf %50, %51 : vector<8x224xf32>
    %c0_37 = arith.constant 0 : index
    %c0_38 = arith.constant 0 : index
    %53 = vector.load %arg6[%c0_37, %c0_38] : memref<8x224xf32, #tpu.memory_space<vmem>>, vector<8x224xf32>
    tpu.vector_store %arg6[%c0_37, %c0_38], %52 {strides = array<i32>} : memref<8x224xf32, #tpu.memory_space<vmem>>, vector<8x224xf32>,
    %54 = vector.extract_strided_slice %49 {offsets = [8, 16], sizes = [8, 224], strides = [1, 1]} : vector<16x256xf32> to vector<8x224xf32>
    %c0_39 = arith.constant 0 : index
    %c0_40 = arith.constant 0 : index
    %55 = vector.load %arg6[%c0_39, %c0_40] : memref<8x224xf32, #tpu.memory_space<vmem>>, vector<8x224xf32>
    %56 = arith.addf %55, %54 : vector<8x224xf32>
    %c0_41 = arith.constant 0 : index
    %c0_42 = arith.constant 0 : index
    %57 = vector.load %arg6[%c0_41, %c0_42] : memref<8x224xf32, #tpu.memory_space<vmem>>, vector<8x224xf32>
    tpu.vector_store %arg6[%c0_41, %c0_42], %56 {strides = array<i32>} : memref<8x224xf32, #tpu.memory_space<vmem>>, vector<8x224xf32>,
    %c48 = arith.constant 48 : index
    %c0_43 = arith.constant 0 : index
    %58 = vector.load %arg2[%c48, %c0_43] : memref<80x4xf32, #tpu.memory_space<vmem>>, vector<16x4xf32>
    %cst_44 = arith.constant dense<0.000000e+00> : vector<16x256xf32>
    %59 = tpu.matmul %58, %1, %cst_44 {dimension_numbers = #tpu.dot_dimension_numbers<[1], [0], [0], [1], [0, 0, 1, 1], [], []>} : vector<16x4xf32>, vector<4x256xf32>, vector<16x256xf32> -> vector<16x256xf32>
    %c0_45 = arith.constant 0 : index
    %c0_46 = arith.constant 0 : index
    %60 = vector.load %arg6[%c0_45, %c0_46] : memref<8x224xf32, #tpu.memory_space<vmem>>, vector<8x224xf32>
    %61 = vector.extract_strided_slice %59 {offsets = [0, 32], sizes = [8, 224], strides = [1, 1]} : vector<16x256xf32> to vector<8x224xf32>
    %62 = arith.addf %60, %61 : vector<8x224xf32>
    %c0_47 = arith.constant 0 : index
    %c0_48 = arith.constant 0 : index
    %63 = vector.load %arg6[%c0_47, %c0_48] : memref<8x224xf32, #tpu.memory_space<vmem>>, vector<8x224xf32>
    tpu.vector_store %arg6[%c0_47, %c0_48], %62 {strides = array<i32>} : memref<8x224xf32, #tpu.memory_space<vmem>>, vector<8x224xf32>,
    %64 = vector.extract_strided_slice %59 {offsets = [8, 17], sizes = [8, 224], strides = [1, 1]} : vector<16x256xf32> to vector<8x224xf32>
    %c0_49 = arith.constant 0 : index
    %c0_50 = arith.constant 0 : index
    %65 = vector.load %arg3[%c0_49, %c0_50] : memref<1x224xi32, #tpu.memory_space<vmem>>, vector<1x224xi32>
    %c1_i32 = arith.constant 1 : i32
    %66 = vector.broadcast %c1_i32 : i32 to vector<1x224xi32>
    %67 = arith.addi %65, %66 : vector<1x224xi32>
    %c0_i32_51 = arith.constant 0 : i32
    %68 = vector.broadcast %c0_i32_51 : i32 to vector<1x224xi32>
    %69 = arith.cmpi sge, %67, %68 : vector<1x224xi32>
    %c16_i32_52 = arith.constant 16 : i32
    %70 = vector.broadcast %c16_i32_52 : i32 to vector<1x224xi32>
    %71 = arith.cmpi slt, %67, %70 : vector<1x224xi32>
    %72 = arith.andi %69, %71 : vector<1x224xi1>
    %cst_53 = arith.constant 0.000000e+00 : f32
    %73 = vector.shape_cast %72 : vector<1x224xi1> to vector<1x224xi1>
    %74 = vector.broadcast %73 : vector<1x224xi1> to vector<8x224xi1>
    %75 = vector.broadcast %cst_53 : f32 to vector<8x224xf32>
    %76 = arith.select %74, %64, %75 : vector<8x224xi1>, vector<8x224xf32>
    %c0_54 = arith.constant 0 : index
    %c0_55 = arith.constant 0 : index
    %77 = vector.load %arg6[%c0_54, %c0_55] : memref<8x224xf32, #tpu.memory_space<vmem>>, vector<8x224xf32>
    %78 = arith.addf %77, %76 : vector<8x224xf32>
    %c0_56 = arith.constant 0 : index
    %c0_57 = arith.constant 0 : index
    %79 = vector.load %arg6[%c0_56, %c0_57] : memref<8x224xf32, #tpu.memory_space<vmem>>, vector<8x224xf32>
    tpu.vector_store %arg6[%c0_56, %c0_57], %78 {strides = array<i32>} : memref<8x224xf32, #tpu.memory_space<vmem>>, vector<8x224xf32>,
    %c64 = arith.constant 64 : index
    %c0_58 = arith.constant 0 : index
    %80 = vector.load %arg2[%c64, %c0_58] : memref<80x4xf32, #tpu.memory_space<vmem>>, vector<16x4xf32>
    %cst_59 = arith.constant dense<0.000000e+00> : vector<16x256xf32>
    %81 = tpu.matmul %80, %1, %cst_59 {dimension_numbers = #tpu.dot_dimension_numbers<[1], [0], [0], [1], [0, 0, 1, 1], [], []>} : vector<16x4xf32>, vector<4x256xf32>, vector<16x256xf32> -> vector<16x256xf32>
    %c0_60 = arith.constant 0 : index
    %c0_61 = arith.constant 0 : index
    %82 = vector.load %arg6[%c0_60, %c0_61] : memref<8x224xf32, #tpu.memory_space<vmem>>, vector<8x208xf32>
    %83 = vector.extract_strided_slice %81 {offsets = [0, 48], sizes = [8, 208], strides = [1, 1]} : vector<16x256xf32> to vector<8x208xf32>
    %84 = arith.addf %82, %83 : vector<8x208xf32>
    %c0_62 = arith.constant 0 : index
    %c0_63 = arith.constant 0 : index
    %85 = vector.load %arg6[%c0_62, %c0_63] : memref<8x224xf32, #tpu.memory_space<vmem>>, vector<8x208xf32>
    tpu.vector_store %arg6[%c0_62, %c0_63], %84 {strides = array<i32>} : memref<8x224xf32, #tpu.memory_space<vmem>>, vector<8x208xf32>,
    %86 = vector.extract_strided_slice %81 {offsets = [8, 18], sizes = [8, 224], strides = [1, 1]} : vector<16x256xf32> to vector<8x224xf32>
    %c0_64 = arith.constant 0 : index
    %c0_65 = arith.constant 0 : index
    %87 = vector.load %arg3[%c0_64, %c0_65] : memref<1x224xi32, #tpu.memory_space<vmem>>, vector<1x224xi32>
    %c2_i32 = arith.constant 2 : i32
    %88 = vector.broadcast %c2_i32 : i32 to vector<1x224xi32>
    %89 = arith.addi %87, %88 : vector<1x224xi32>
    %c0_i32_66 = arith.constant 0 : i32
    %90 = vector.broadcast %c0_i32_66 : i32 to vector<1x224xi32>
    %91 = arith.cmpi sge, %89, %90 : vector<1x224xi32>
    %c16_i32_67 = arith.constant 16 : i32
    %92 = vector.broadcast %c16_i32_67 : i32 to vector<1x224xi32>
    %93 = arith.cmpi slt, %89, %92 : vector<1x224xi32>
    %94 = arith.andi %91, %93 : vector<1x224xi1>
    %cst_68 = arith.constant 0.000000e+00 : f32
    %95 = vector.shape_cast %94 : vector<1x224xi1> to vector<1x224xi1>
    %96 = vector.broadcast %95 : vector<1x224xi1> to vector<8x224xi1>
    %97 = vector.broadcast %cst_68 : f32 to vector<8x224xf32>
    %98 = arith.select %96, %86, %97 : vector<8x224xi1>, vector<8x224xf32>
    %c0_69 = arith.constant 0 : index
    %c0_70 = arith.constant 0 : index
    %99 = vector.load %arg6[%c0_69, %c0_70] : memref<8x224xf32, #tpu.memory_space<vmem>>, vector<8x224xf32>
    %100 = arith.addf %99, %98 : vector<8x224xf32>
    %c0_71 = arith.constant 0 : index
    %c0_72 = arith.constant 0 : index
    %101 = vector.load %arg6[%c0_71, %c0_72] : memref<8x224xf32, #tpu.memory_space<vmem>>, vector<8x224xf32>
    tpu.vector_store %arg6[%c0_71, %c0_72], %100 {strides = array<i32>} : memref<8x224xf32, #tpu.memory_space<vmem>>, vector<8x224xf32>,
    %c0_73 = arith.constant 0 : index
    %c1 = arith.constant 1 : index
    %102 = vector.load %arg6[%c0_73, %c1] : memref<8x224xf32, #tpu.memory_space<vmem>>, vector<8x14xf32>
    %c0_74 = arith.constant 0 : index
    %c0_75 = arith.constant 0 : index
    %103 = vector.load %arg4[%c0_74, %c0_75] : memref<8x1xf32, #tpu.memory_space<vmem>>, vector<8x1xf32>
    %104 = vector.broadcast %103 : vector<8x1xf32> to vector<8x14xf32>
    %105 = arith.addf %102, %104 : vector<8x14xf32>
    %c0_76 = arith.constant 0 : index
    %c0_77 = arith.constant 0 : index
    %c0_78 = arith.constant 0 : index
    %106 = vector.load %arg5[%c0_76, %c0_77, %c0_78] : memref<1x8x196xf32, #tpu.memory_space<vmem>>, vector<1x8x14xf32>
    %107 = vector.shape_cast %106 : vector<1x8x14xf32> to vector<8x14xf32>
    %108 = vector.shape_cast %105 : vector<8x14xf32> to vector<1x8x14xf32>
    tpu.vector_store %arg5[%c0_76, %c0_77, %c0_78], %108 {strides = array<i32>} : memref<1x8x196xf32, #tpu.memory_space<vmem>>, vector<1x8x14xf32>,
    %c0_79 = arith.constant 0 : index
    %c17 = arith.constant 17 : index
    %109 = vector.load %arg6[%c0_79, %c17] : memref<8x224xf32, #tpu.memory_space<vmem>>, vector<8x14xf32>
    %c0_80 = arith.constant 0 : index
    %c0_81 = arith.constant 0 : index
    %110 = vector.load %arg4[%c0_80, %c0_81] : memref<8x1xf32, #tpu.memory_space<vmem>>, vector<8x1xf32>
    %111 = vector.broadcast %110 : vector<8x1xf32> to vector<8x14xf32>
    %112 = arith.addf %109, %111 : vector<8x14xf32>
    %c0_82 = arith.constant 0 : index
    %c0_83 = arith.constant 0 : index
    %c14 = arith.constant 14 : index
    %113 = vector.load %arg5[%c0_82, %c0_83, %c14] : memref<1x8x196xf32, #tpu.memory_space<vmem>>, vector<1x8x14xf32>
    %114 = vector.shape_cast %113 : vector<1x8x14xf32> to vector<8x14xf32>
    %115 = vector.shape_cast %112 : vector<8x14xf32> to vector<1x8x14xf32>
    tpu.vector_store %arg5[%c0_82, %c0_83, %c14], %115 {strides = array<i32>} : memref<1x8x196xf32, #tpu.memory_space<vmem>>, vector<1x8x14xf32>,
    %c0_84 = arith.constant 0 : index
    %c33 = arith.constant 33 : index
    %116 = vector.load %arg6[%c0_84, %c33] : memref<8x224xf32, #tpu.memory_space<vmem>>, vector<8x14xf32>
    %c0_85 = arith.constant 0 : index
    %c0_86 = arith.constant 0 : index
    %117 = vector.load %arg4[%c0_85, %c0_86] : memref<8x1xf32, #tpu.memory_space<vmem>>, vector<8x1xf32>
    %118 = vector.broadcast %117 : vector<8x1xf32> to vector<8x14xf32>
    %119 = arith.addf %116, %118 : vector<8x14xf32>
    %c0_87 = arith.constant 0 : index
    %c0_88 = arith.constant 0 : index
    %c28 = arith.constant 28 : index
    %120 = vector.load %arg5[%c0_87, %c0_88, %c28] : memref<1x8x196xf32, #tpu.memory_space<vmem>>, vector<1x8x14xf32>
    %121 = vector.shape_cast %120 : vector<1x8x14xf32> to vector<8x14xf32>
    %122 = vector.shape_cast %119 : vector<8x14xf32> to vector<1x8x14xf32>
    tpu.vector_store %arg5[%c0_87, %c0_88, %c28], %122 {strides = array<i32>} : memref<1x8x196xf32, #tpu.memory_space<vmem>>, vector<1x8x14xf32>,
    %c0_89 = arith.constant 0 : index
    %c49 = arith.constant 49 : index
    %123 = vector.load %arg6[%c0_89, %c49] : memref<8x224xf32, #tpu.memory_space<vmem>>, vector<8x14xf32>
    %c0_90 = arith.constant 0 : index
    %c0_91 = arith.constant 0 : index
    %124 = vector.load %arg4[%c0_90, %c0_91] : memref<8x1xf32, #tpu.memory_space<vmem>>, vector<8x1xf32>
    %125 = vector.broadcast %124 : vector<8x1xf32> to vector<8x14xf32>
    %126 = arith.addf %123, %125 : vector<8x14xf32>
    %c0_92 = arith.constant 0 : index
    %c0_93 = arith.constant 0 : index
    %c42 = arith.constant 42 : index
    %127 = vector.load %arg5[%c0_92, %c0_93, %c42] : memref<1x8x196xf32, #tpu.memory_space<vmem>>, vector<1x8x14xf32>
    %128 = vector.shape_cast %127 : vector<1x8x14xf32> to vector<8x14xf32>
    %129 = vector.shape_cast %126 : vector<8x14xf32> to vector<1x8x14xf32>
    tpu.vector_store %arg5[%c0_92, %c0_93, %c42], %129 {strides = array<i32>} : memref<1x8x196xf32, #tpu.memory_space<vmem>>, vector<1x8x14xf32>,
    %c0_94 = arith.constant 0 : index
    %c65 = arith.constant 65 : index
    %130 = vector.load %arg6[%c0_94, %c65] : memref<8x224xf32, #tpu.memory_space<vmem>>, vector<8x14xf32>
    %c0_95 = arith.constant 0 : index
    %c0_96 = arith.constant 0 : index
    %131 = vector.load %arg4[%c0_95, %c0_96] : memref<8x1xf32, #tpu.memory_space<vmem>>, vector<8x1xf32>
    %132 = vector.broadcast %131 : vector<8x1xf32> to vector<8x14xf32>
    %133 = arith.addf %130, %132 : vector<8x14xf32>
    %c0_97 = arith.constant 0 : index
    %c0_98 = arith.constant 0 : index
    %c56 = arith.constant 56 : index
    %134 = vector.load %arg5[%c0_97, %c0_98, %c56] : memref<1x8x196xf32, #tpu.memory_space<vmem>>, vector<1x8x14xf32>
    %135 = vector.shape_cast %134 : vector<1x8x14xf32> to vector<8x14xf32>
    %136 = vector.shape_cast %133 : vector<8x14xf32> to vector<1x8x14xf32>
    tpu.vector_store %arg5[%c0_97, %c0_98, %c56], %136 {strides = array<i32>} : memref<1x8x196xf32, #tpu.memory_space<vmem>>, vector<1x8x14xf32>,
    %c0_99 = arith.constant 0 : index
    %c81 = arith.constant 81 : index
    %137 = vector.load %arg6[%c0_99, %c81] : memref<8x224xf32, #tpu.memory_space<vmem>>, vector<8x14xf32>
    %c0_100 = arith.constant 0 : index
    %c0_101 = arith.constant 0 : index
    %138 = vector.load %arg4[%c0_100, %c0_101] : memref<8x1xf32, #tpu.memory_space<vmem>>, vector<8x1xf32>
    %139 = vector.broadcast %138 : vector<8x1xf32> to vector<8x14xf32>
    %140 = arith.addf %137, %139 : vector<8x14xf32>
    %c0_102 = arith.constant 0 : index
    %c0_103 = arith.constant 0 : index
    %c70 = arith.constant 70 : index
    %141 = vector.load %arg5[%c0_102, %c0_103, %c70] : memref<1x8x196xf32, #tpu.memory_space<vmem>>, vector<1x8x14xf32>
    %142 = vector.shape_cast %141 : vector<1x8x14xf32> to vector<8x14xf32>
    %143 = vector.shape_cast %140 : vector<8x14xf32> to vector<1x8x14xf32>
    tpu.vector_store %arg5[%c0_102, %c0_103, %c70], %143 {strides = array<i32>} : memref<1x8x196xf32, #tpu.memory_space<vmem>>, vector<1x8x14xf32>,
    %c0_104 = arith.constant 0 : index
    %c97 = arith.constant 97 : index
    %144 = vector.load %arg6[%c0_104, %c97] : memref<8x224xf32, #tpu.memory_space<vmem>>, vector<8x14xf32>
    %c0_105 = arith.constant 0 : index
    %c0_106 = arith.constant 0 : index
    %145 = vector.load %arg4[%c0_105, %c0_106] : memref<8x1xf32, #tpu.memory_space<vmem>>, vector<8x1xf32>
    %146 = vector.broadcast %145 : vector<8x1xf32> to vector<8x14xf32>
    %147 = arith.addf %144, %146 : vector<8x14xf32>
    %c0_107 = arith.constant 0 : index
    %c0_108 = arith.constant 0 : index
    %c84 = arith.constant 84 : index
    %148 = vector.load %arg5[%c0_107, %c0_108, %c84] : memref<1x8x196xf32, #tpu.memory_space<vmem>>, vector<1x8x14xf32>
    %149 = vector.shape_cast %148 : vector<1x8x14xf32> to vector<8x14xf32>
    %150 = vector.shape_cast %147 : vector<8x14xf32> to vector<1x8x14xf32>
    tpu.vector_store %arg5[%c0_107, %c0_108, %c84], %150 {strides = array<i32>} : memref<1x8x196xf32, #tpu.memory_space<vmem>>, vector<1x8x14xf32>,
    %c0_109 = arith.constant 0 : index
    %c113 = arith.constant 113 : index
    %151 = vector.load %arg6[%c0_109, %c113] : memref<8x224xf32, #tpu.memory_space<vmem>>, vector<8x14xf32>
    %c0_110 = arith.constant 0 : index
    %c0_111 = arith.constant 0 : index
    %152 = vector.load %arg4[%c0_110, %c0_111] : memref<8x1xf32, #tpu.memory_space<vmem>>, vector<8x1xf32>
    %153 = vector.broadcast %152 : vector<8x1xf32> to vector<8x14xf32>
    %154 = arith.addf %151, %153 : vector<8x14xf32>
    %c0_112 = arith.constant 0 : index
    %c0_113 = arith.constant 0 : index
    %c98 = arith.constant 98 : index
    %155 = vector.load %arg5[%c0_112, %c0_113, %c98] : memref<1x8x196xf32, #tpu.memory_space<vmem>>, vector<1x8x14xf32>
    %156 = vector.shape_cast %155 : vector<1x8x14xf32> to vector<8x14xf32>
    %157 = vector.shape_cast %154 : vector<8x14xf32> to vector<1x8x14xf32>
    tpu.vector_store %arg5[%c0_112, %c0_113, %c98], %157 {strides = array<i32>} : memref<1x8x196xf32, #tpu.memory_space<vmem>>, vector<1x8x14xf32>,
    %c0_114 = arith.constant 0 : index
    %c129 = arith.constant 129 : index
    %158 = vector.load %arg6[%c0_114, %c129] : memref<8x224xf32, #tpu.memory_space<vmem>>, vector<8x14xf32>
    %c0_115 = arith.constant 0 : index
    %c0_116 = arith.constant 0 : index
    %159 = vector.load %arg4[%c0_115, %c0_116] : memref<8x1xf32, #tpu.memory_space<vmem>>, vector<8x1xf32>
    %160 = vector.broadcast %159 : vector<8x1xf32> to vector<8x14xf32>
    %161 = arith.addf %158, %160 : vector<8x14xf32>
    %c0_117 = arith.constant 0 : index
    %c0_118 = arith.constant 0 : index
    %c112 = arith.constant 112 : index
    %162 = vector.load %arg5[%c0_117, %c0_118, %c112] : memref<1x8x196xf32, #tpu.memory_space<vmem>>, vector<1x8x14xf32>
    %163 = vector.shape_cast %162 : vector<1x8x14xf32> to vector<8x14xf32>
    %164 = vector.shape_cast %161 : vector<8x14xf32> to vector<1x8x14xf32>
    tpu.vector_store %arg5[%c0_117, %c0_118, %c112], %164 {strides = array<i32>} : memref<1x8x196xf32, #tpu.memory_space<vmem>>, vector<1x8x14xf32>,
    %c0_119 = arith.constant 0 : index
    %c145 = arith.constant 145 : index
    %165 = vector.load %arg6[%c0_119, %c145] : memref<8x224xf32, #tpu.memory_space<vmem>>, vector<8x14xf32>
    %c0_120 = arith.constant 0 : index
    %c0_121 = arith.constant 0 : index
    %166 = vector.load %arg4[%c0_120, %c0_121] : memref<8x1xf32, #tpu.memory_space<vmem>>, vector<8x1xf32>
    %167 = vector.broadcast %166 : vector<8x1xf32> to vector<8x14xf32>
    %168 = arith.addf %165, %167 : vector<8x14xf32>
    %c0_122 = arith.constant 0 : index
    %c0_123 = arith.constant 0 : index
    %c126 = arith.constant 126 : index
    %169 = vector.load %arg5[%c0_122, %c0_123, %c126] : memref<1x8x196xf32, #tpu.memory_space<vmem>>, vector<1x8x14xf32>
    %170 = vector.shape_cast %169 : vector<1x8x14xf32> to vector<8x14xf32>
    %171 = vector.shape_cast %168 : vector<8x14xf32> to vector<1x8x14xf32>
    tpu.vector_store %arg5[%c0_122, %c0_123, %c126], %171 {strides = array<i32>} : memref<1x8x196xf32, #tpu.memory_space<vmem>>, vector<1x8x14xf32>,
    %c0_124 = arith.constant 0 : index
    %c161 = arith.constant 161 : index
    %172 = vector.load %arg6[%c0_124, %c161] : memref<8x224xf32, #tpu.memory_space<vmem>>, vector<8x14xf32>
    %c0_125 = arith.constant 0 : index
    %c0_126 = arith.constant 0 : index
    %173 = vector.load %arg4[%c0_125, %c0_126] : memref<8x1xf32, #tpu.memory_space<vmem>>, vector<8x1xf32>
    %174 = vector.broadcast %173 : vector<8x1xf32> to vector<8x14xf32>
    %175 = arith.addf %172, %174 : vector<8x14xf32>
    %c0_127 = arith.constant 0 : index
    %c0_128 = arith.constant 0 : index
    %c140 = arith.constant 140 : index
    %176 = vector.load %arg5[%c0_127, %c0_128, %c140] : memref<1x8x196xf32, #tpu.memory_space<vmem>>, vector<1x8x14xf32>
    %177 = vector.shape_cast %176 : vector<1x8x14xf32> to vector<8x14xf32>
    %178 = vector.shape_cast %175 : vector<8x14xf32> to vector<1x8x14xf32>
    tpu.vector_store %arg5[%c0_127, %c0_128, %c140], %178 {strides = array<i32>} : memref<1x8x196xf32, #tpu.memory_space<vmem>>, vector<1x8x14xf32>,
    %c0_129 = arith.constant 0 : index
    %c177 = arith.constant 177 : index
    %179 = vector.load %arg6[%c0_129, %c177] : memref<8x224xf32, #tpu.memory_space<vmem>>, vector<8x14xf32>
    %c0_130 = arith.constant 0 : index
    %c0_131 = arith.constant 0 : index
    %180 = vector.load %arg4[%c0_130, %c0_131] : memref<8x1xf32, #tpu.memory_space<vmem>>, vector<8x1xf32>
    %181 = vector.broadcast %180 : vector<8x1xf32> to vector<8x14xf32>
    %182 = arith.addf %179, %181 : vector<8x14xf32>
    %c0_132 = arith.constant 0 : index
    %c0_133 = arith.constant 0 : index
    %c154 = arith.constant 154 : index
    %183 = vector.load %arg5[%c0_132, %c0_133, %c154] : memref<1x8x196xf32, #tpu.memory_space<vmem>>, vector<1x8x14xf32>
    %184 = vector.shape_cast %183 : vector<1x8x14xf32> to vector<8x14xf32>
    %185 = vector.shape_cast %182 : vector<8x14xf32> to vector<1x8x14xf32>
    tpu.vector_store %arg5[%c0_132, %c0_133, %c154], %185 {strides = array<i32>} : memref<1x8x196xf32, #tpu.memory_space<vmem>>, vector<1x8x14xf32>,
    %c0_134 = arith.constant 0 : index
    %c193 = arith.constant 193 : index
    %186 = vector.load %arg6[%c0_134, %c193] : memref<8x224xf32, #tpu.memory_space<vmem>>, vector<8x14xf32>
    %c0_135 = arith.constant 0 : index
    %c0_136 = arith.constant 0 : index
    %187 = vector.load %arg4[%c0_135, %c0_136] : memref<8x1xf32, #tpu.memory_space<vmem>>, vector<8x1xf32>
    %188 = vector.broadcast %187 : vector<8x1xf32> to vector<8x14xf32>
    %189 = arith.addf %186, %188 : vector<8x14xf32>
    %c0_137 = arith.constant 0 : index
    %c0_138 = arith.constant 0 : index
    %c168 = arith.constant 168 : index
    %190 = vector.load %arg5[%c0_137, %c0_138, %c168] : memref<1x8x196xf32, #tpu.memory_space<vmem>>, vector<1x8x14xf32>
    %191 = vector.shape_cast %190 : vector<1x8x14xf32> to vector<8x14xf32>
    %192 = vector.shape_cast %189 : vector<8x14xf32> to vector<1x8x14xf32>
    tpu.vector_store %arg5[%c0_137, %c0_138, %c168], %192 {strides = array<i32>} : memref<1x8x196xf32, #tpu.memory_space<vmem>>, vector<1x8x14xf32>,
    %c0_139 = arith.constant 0 : index
    %c209 = arith.constant 209 : index
    %193 = vector.load %arg6[%c0_139, %c209] : memref<8x224xf32, #tpu.memory_space<vmem>>, vector<8x14xf32>
    %c0_140 = arith.constant 0 : index
    %c0_141 = arith.constant 0 : index
    %194 = vector.load %arg4[%c0_140, %c0_141] : memref<8x1xf32, #tpu.memory_space<vmem>>, vector<8x1xf32>
    %195 = vector.broadcast %194 : vector<8x1xf32> to vector<8x14xf32>
    %196 = arith.addf %193, %195 : vector<8x14xf32>
    %c0_142 = arith.constant 0 : index
    %c0_143 = arith.constant 0 : index
    %c182 = arith.constant 182 : index
    %197 = vector.load %arg5[%c0_142, %c0_143, %c182] : memref<1x8x196xf32, #tpu.memory_space<vmem>>, vector<1x8x14xf32>
    %198 = vector.shape_cast %197 : vector<1x8x14xf32> to vector<8x14xf32>
    %199 = vector.shape_cast %196 : vector<8x14xf32> to vector<1x8x14xf32>
    tpu.vector_store %arg5[%c0_142, %c0_143, %c182], %199 {strides = array<i32>} : memref<1x8x196xf32, #tpu.memory_space<vmem>>, vector<1x8x14xf32>,
    return
  }
  func.func @transform_0(%arg0: i32) -> (i32, i32, i32) {
    %c0_i32 = arith.constant 0 : i32
    %c0_i32_0 = arith.constant 0 : i32
    %c0_i32_1 = arith.constant 0 : i32
    return %arg0, %c0_i32, %c0_i32_0 : i32, i32, i32
  }
  func.func @transform_1(%arg0: i32) -> (i32, i32) {
    %c0_i32 = arith.constant 0 : i32
    %c0_i32_0 = arith.constant 0 : i32
    %c0_i32_1 = arith.constant 0 : i32
    return %c0_i32, %c0_i32_0 : i32, i32
  }
  func.func @transform_2(%arg0: i32) -> (i32, i32) {
    %c0_i32 = arith.constant 0 : i32
    %c0_i32_0 = arith.constant 0 : i32
    %c0_i32_1 = arith.constant 0 : i32
    return %c0_i32, %c0_i32_0 : i32, i32
  }
  func.func @transform_3(%arg0: i32) -> (i32, i32) {
    %c0_i32 = arith.constant 0 : i32
    %c0_i32_0 = arith.constant 0 : i32
    %c0_i32_1 = arith.constant 0 : i32
    return %c0_i32, %c0_i32_0 : i32, i32
  }
  func.func @transform_4(%arg0: i32) -> (i32, i32, i32) {
    %c0_i32 = arith.constant 0 : i32
    %c0_i32_0 = arith.constant 0 : i32
    %c0_i32_1 = arith.constant 0 : i32
    return %arg0, %c0_i32, %c0_i32_0 : i32, i32, i32
  }
}

</mosaic_0001>

<llo_original>
// kernel: tpu_custom_call.1
$region0: #{tpu_custom_call.1}
  #allocation0 [shape = 'u32[]', space=smem, size = 0x4, offset = 0x4, fixed_abs, tag = 'smem constant byte address 0x4 - core index']
  #allocation1 [shape = 'u32[144,128]{1,0:T(1,128)}', space=vmem, size = 0x12000, scoped, tag = 'internal scratch']
  #allocation2 [shape = 'f32[8,224]{1,0:T(8,128)}', space=vmem, size = 0x2000, scoped, tag = 'scratch operand']
  %s0 = inlined_call_operand.vmem [shape: f32[2,4,256], index: 0, kind: input, shape index: {}]
  %s1 = inlined_call_operand.vmem [shape: f32[80,4], index: 1, kind: input, shape index: {}]
  %s2 = inlined_call_operand.vmem [shape: s32[1,224], index: 2, kind: input, shape index: {}]
  %s3 = inlined_call_operand.vmem [shape: f32[8,1], index: 3, kind: input, shape index: {}]
  %s4 = inlined_call_operand.hbm [shape: f32[2,8,196], index: 4, kind: output, shape index: {}]
  %s5 = sld [smem:[#allocation0]]
  $region49: #{tpu_custom_call.1} parent=0
    _
  %s7 = ssub.s32 1, %s5
  %s8 = scalar_select 0, %s7, %s5
  $region1: #{tpu_custom_call.1} parent=0
    #allocation3 [shape = 'u8[16384]{0}', space=vmem, size = 0x4000, scoped, tag = 'output window, operand 0']
    #allocation4 [shape = 's32[2]{0}', space=sflag, size = 0x8, scoped, tag = 'scoped memory for tpu_custom_call.1']
    %9 = vsyncpa [#allocation4], 0
    %s10 = scalar_lea.sflag [#allocation4], 1
    %11 = vsyncpa %s10, 0
    loop: start=0, step=1, limit=4
    $region2: #{tpu_custom_call.1} parent=1 // loop_pre_header
      _
    $region3: #{tpu_custom_call.1} parent=1 // loop_header
      %s13 = sphi 0, %s17
      %p14 = scmp.ge.s32.totalorder %s13, 4
      %s23 = sphi 0, %s25
      %s26 = sphi 0, %s23
      %s27 = sphi 0, %s26
      %s43 = sphi 0, %s27
      %s47 = sphi 0, %s47
      %s49 = sphi 0, %s47
      %s50 = sphi 0, %s49
      %s64 = sphi 0, %s50
      %s68 = sphi 0, %s68
      %s70 = sphi 0, %s68
      %s71 = sphi 0, %s70
      %s85 = sphi 0, %s71
      %s89 = sphi 0, %s89
      %s91 = sphi 0, %s89
      %s92 = sphi 0, %s91
      %s106 = sphi 0, %s92
      %s112 = sphi 0, %s114
      %s115 = sphi 0, %s112
      %s116 = sphi 0, %s115
      %s132 = sphi 0, %s116
    $region4: #{tpu_custom_call.1} parent=1 // loop_header_branch
      %16 = sbr.rel (%p14) target = $region8
    $region5: #{tpu_custom_call.1} parent=1 // loop_body
      %s18 = ssub.s32 %s13, 1
      %s19 = ssub.s32 %s13, 2
      %s20 = sadd.s32 %s13, 1
      %s21 = ssub.s32 %s13, %s20
      %p22 = scmp.eq.s32.totalorder %s21, 0
      %s24 = sadd.s32 %s23, 1
      %s25 = scalar_select %p22, %s23, %s24
      %p28 = pneg %p22
      %p29 = scmp.eq.s32.totalorder %s13, 1
      %p30 = por %p28, %p29
      %p31 = scmp.ne.s32.totalorder %s23, %s26
      %p32 = scmp.eq.s32.totalorder %s13, 0
      %p33 = por %p31, %p32
      %p34 = scmp.ne.s32.totalorder %s23, %s26
      %p35 = scmp.eq.s32.totalorder %s18, 1
      %p36 = por %p34, %p35
      %p37 = scmp.ne.s32.totalorder %s26, %s27
      %p38 = scmp.eq.s32.totalorder %s18, 0
      %p39 = por %p37, %p38
      %p40 = scmp.ne.s32.totalorder %s26, %s27
      %p41 = scmp.eq.s32.totalorder %s19, 1
      %p42 = por %p40, %p41
      %p44 = scmp.ne.s32.totalorder %s27, %s43
      %p45 = scmp.eq.s32.totalorder %s19, 0
      %p46 = por %p44, %p45
      %s48 = sadd.s32 %s47, 1
      %p51 = scmp.eq.s32.totalorder %s13, 1
      %p52 = scmp.ne.s32.totalorder %s47, %s49
      %p53 = scmp.eq.s32.totalorder %s13, 0
      %p54 = por %p52, %p53
      %p55 = scmp.ne.s32.totalorder %s47, %s49
      %p56 = scmp.eq.s32.totalorder %s18, 1
      %p57 = por %p55, %p56
      %p58 = scmp.ne.s32.totalorder %s49, %s50
      %p59 = scmp.eq.s32.totalorder %s18, 0
      %p60 = por %p58, %p59
      %p61 = scmp.ne.s32.totalorder %s49, %s50
      %p62 = scmp.eq.s32.totalorder %s19, 1
      %p63 = por %p61, %p62
      %p65 = scmp.ne.s32.totalorder %s50, %s64
      %p66 = scmp.eq.s32.totalorder %s19, 0
      %p67 = por %p65, %p66
      %s69 = sadd.s32 %s68, 1
      %p72 = scmp.eq.s32.totalorder %s13, 1
      %p73 = scmp.ne.s32.totalorder %s68, %s70
      %p74 = scmp.eq.s32.totalorder %s13, 0
      %p75 = por %p73, %p74
      %p76 = scmp.ne.s32.totalorder %s68, %s70
      %p77 = scmp.eq.s32.totalorder %s18, 1
      %p78 = por %p76, %p77
      %p79 = scmp.ne.s32.totalorder %s70, %s71
      %p80 = scmp.eq.s32.totalorder %s18, 0
      %p81 = por %p79, %p80
      %p82 = scmp.ne.s32.totalorder %s70, %s71
      %p83 = scmp.eq.s32.totalorder %s19, 1
      %p84 = por %p82, %p83
      %p86 = scmp.ne.s32.totalorder %s71, %s85
      %p87 = scmp.eq.s32.totalorder %s19, 0
      %p88 = por %p86, %p87
      %s90 = sadd.s32 %s89, 1
      %p93 = scmp.eq.s32.totalorder %s13, 1
      %p94 = scmp.ne.s32.totalorder %s89, %s91
      %p95 = scmp.eq.s32.totalorder %s13, 0
      %p96 = por %p94, %p95
      %p97 = scmp.ne.s32.totalorder %s89, %s91
      %p98 = scmp.eq.s32.totalorder %s18, 1
      %p99 = por %p97, %p98
      %p100 = scmp.ne.s32.totalorder %s91, %s92
      %p101 = scmp.eq.s32.totalorder %s18, 0
      %p102 = por %p100, %p101
      %p103 = scmp.ne.s32.totalorder %s91, %s92
      %p104 = scmp.eq.s32.totalorder %s19, 1
      %p105 = por %p103, %p104
      %p107 = scmp.ne.s32.totalorder %s92, %s106
      %p108 = scmp.eq.s32.totalorder %s19, 0
      %p109 = por %p107, %p108
      %s110 = ssub.s32 %s13, %s20
      %p111 = scmp.eq.s32.totalorder %s110, 0
      %s113 = sadd.s32 %s112, 1
      %s114 = scalar_select %p111, %s112, %s113
      %p117 = pneg %p111
      %p118 = scmp.eq.s32.totalorder %s13, 1
      %p119 = por %p117, %p118
      %p120 = scmp.ne.s32.totalorder %s112, %s115
      %p121 = scmp.eq.s32.totalorder %s13, 0
      %p122 = por %p120, %p121
      %p123 = scmp.ne.s32.totalorder %s112, %s115
      %p124 = scmp.eq.s32.totalorder %s18, 1
      %p125 = por %p123, %p124
      %p126 = scmp.ne.s32.totalorder %s115, %s116
      %p127 = scmp.eq.s32.totalorder %s18, 0
      %p128 = por %p126, %p127
      %p129 = scmp.ne.s32.totalorder %s115, %s116
      %p130 = scmp.eq.s32.totalorder %s19, 1
      %p131 = por %p129, %p130
      %p133 = scmp.ne.s32.totalorder %s116, %s132
      %p134 = scmp.eq.s32.totalorder %s19, 0
      %p135 = por %p133, %p134
      %p136 = scmp.le.s32.totalorder 1, %s13
      %p137 = scmp.lt.s32.totalorder %s13, 3
      %p138 = pnand %p136, %p137
      %p139 = pneg %p138
      // Predicated region
      $region9: #{tpu_custom_call.1} parent=5 // pred_check
        _
      $region10: #{tpu_custom_call.1} parent=5 // pred_check_branch
        %141 = sbr.rel (%p138) target = $region12
      $region11: #{tpu_custom_call.1} parent=5 // pred_region
        %s142 = ssub.s32 %s13, 1
        // Predicated region
        $region13: #{tpu_custom_call.1} parent=11 // pred_check
          %p143 = pneg %p60
        $region14: #{tpu_custom_call.1} parent=11 // pred_check_branch
          %145 = sbr.rel (%p143) target = $region16
        $region15: #{tpu_custom_call.1} parent=11 // pred_region
          _
        $region16: #{tpu_custom_call.1} parent=11 // pred_fallthru
          _
        // Predicated region
        $region17: #{tpu_custom_call.1} parent=11 // pred_check
          %p146 = pneg %p81
        $region18: #{tpu_custom_call.1} parent=11 // pred_check_branch
          %148 = sbr.rel (%p146) target = $region20
        $region19: #{tpu_custom_call.1} parent=11 // pred_region
          _
        $region20: #{tpu_custom_call.1} parent=11 // pred_fallthru
          _
        // Predicated region
        $region21: #{tpu_custom_call.1} parent=11 // pred_check
          %p149 = pneg %p102
        $region22: #{tpu_custom_call.1} parent=11 // pred_check_branch
          %151 = sbr.rel (%p149) target = $region24
        $region23: #{tpu_custom_call.1} parent=11 // pred_region
          _
        $region24: #{tpu_custom_call.1} parent=11 // pred_fallthru
          _
      $region12: #{tpu_custom_call.1} parent=5 // pred_fallthru
        _
      %p152 = scmp.lt.s32.totalorder %s13, 2
      // Predicated region
      $region25: #{tpu_custom_call.1} parent=5 // pred_check
        %p153 = pneg %p152
      $region26: #{tpu_custom_call.1} parent=5 // pred_check_branch
        %155 = sbr.rel (%p153) target = $region28
      $region27: #{tpu_custom_call.1} parent=5 // pred_region
        // Predicated region
        $region29: #{tpu_custom_call.1} parent=27 // pred_check
          %p156 = pneg %p33
        $region30: #{tpu_custom_call.1} parent=27 // pred_check_branch
          %158 = sbr.rel (%p156) target = $region32
        $region31: #{tpu_custom_call.1} parent=27 // pred_region
          %p159 = scmp.lt.s32.totalorder %s13, 1
          %s160 = scalar_select %p159, %s13, 1
          %s161 = smul.addr %s160, 2
          %s162 = smul.addr %s161, 4
          %s163 = scalar_lea.vmem %s0, %s162
        $region32: #{tpu_custom_call.1} parent=27 // pred_fallthru
          _
      $region28: #{tpu_custom_call.1} parent=5 // pred_fallthru
        _
      %p164 = scmp.le.s32.totalorder 1, %s13
      %p165 = scmp.lt.s32.totalorder %s13, 3
      %p166 = pnand %p164, %p165
      %p167 = pneg %p166
      // Predicated region
      $region33: #{tpu_custom_call.1} parent=5 // pred_check
        _
      $region34: #{tpu_custom_call.1} parent=5 // pred_check_branch
        %169 = sbr.rel (%p166) target = $region36
      $region35: #{tpu_custom_call.1} parent=5 // pred_region
        %s170 = ssub.s32 %s13, 1
        %p171 = scmp.lt.s32.totalorder %s18, 1
        %s172 = scalar_select %p171, %s18, 1
        %s173 = smul.addr %s172, 2
        %s174 = smul.addr %s173, 4
        %s175 = scalar_lea.vmem %s0, %s174
        %p176 = pneg %p39
        %p177 = pneg %p36
        %p178 = pneg %p60
        %p179 = pneg %p57
        %p180 = pneg %p81
        %p181 = pneg %p78
        %p182 = pneg %p102
        %p183 = pneg %p99
        %p184 = pneg %p128
        %p185 = pneg %p125
        %s186 = sand.u32 %s115, 1
        %s187 = scalar_lea.sflag [#allocation4], %s186
        %s188 = sand.u32 %s115, 1
        %s189 = smul.addr %s188, 16
        %s190 = scalar_lea.vmem [#allocation3], %s189
        %p191 = scmp.lt.s32.totalorder %s18, 1
        %s192 = scalar_select %p191, %s18, 1
        %s193 = smul.addr %s192, 2
        %s194 = smul.addr %s193, 4
        %s195 = scalar_lea.vmem %s0, %s194
        %v196 = vld [vmem:[%s195] sm:$0xff]
        %197 = vst [vmem:[#allocation2] sm:$0xff] 0.0
        %vm198 = vcmask 785408
        %199 = vst.msk [vmem:[#allocation2 + $0x8] sm:$0xff] %vm198, 0.0
        %v200 = vld [vmem:[%s1] sm:$0xff]
        %v201 = vld [vmem:[%s1 + $0x8] sm:$0xff]
        %v203 = vcombine.high %v196, %v196
        %vm204 = vcmask 31744
        %v206 = vsel %vm204, %v200, 0
        %v209 = vsel %vm204, %v201, 0
        %vm211 = vcmask 1043456
        %v212 = vsel %vm211, %v196, 0
        %v214 = vsel %vm211, %v203, 0
        %216 = vmatprep.subr.mxu0 %v214
        %217 = vmatpush1.msra.mxu0 %v212
        %218 = vmatprep.subr.mxu0 0.0
        %219 = vmatpush1.msra.mxu0 0.0
        %220 = vmatprep.subr.mxu0 0.0
        %221 = vmatpush1.msra.mxu0 0.0
        %222 = vmatprep.subr.mxu0 0.0
        %223 = vmatpush1.msra.mxu0 0.0
        %224 = vmatprep.subr.mxu0 0.0
        %225 = vmatpush1.msra.mxu0 0.0
        %226 = vmatprep.subr.mxu0 0.0
        %227 = vmatpush1.msra.mxu0 0.0
        %228 = vmatprep.subr.mxu0 0.0
        %229 = vmatpush1.msra.mxu0 0.0
        %230 = vmatprep.subr.mxu0 0.0
        %231 = vmatpush1.msra.mxu0 0.0
        %232 = vmatprep.subr.mxu0 0.0
        %233 = vmatpush1.msra.mxu0 0.0
        %234 = vmatprep.subr.mxu0 0.0
        %235 = vmatpush1.msra.mxu0 0.0
        %236 = vmatprep.subr.mxu0 0.0
        %237 = vmatpush1.msra.mxu0 0.0
        %238 = vmatprep.subr.mxu0 0.0
        %239 = vmatpush1.msra.mxu0 0.0
        %240 = vmatprep.subr.mxu0 0.0
        %241 = vmatpush1.msra.mxu0 0.0
        %242 = vmatprep.subr.mxu0 0.0
        %243 = vmatpush1.msra.mxu0 0.0
        %244 = vmatprep.subr.mxu0 0.0
        %245 = vmatpush1.msra.mxu0 0.0
        %246 = vmatprep.subr.mxu0 0.0
        %247 = vmatpush1.msra.mxu0 0.0
        %248 = vmatprep.subr.mxu0 0.0
        %249 = vmatpush1.msra.mxu0 0.0
        %250 = vmatprep.subr.mxu0 0.0
        %251 = vmatpush1.msra.mxu0 0.0
        %252 = vmatprep.subr.mxu0 0.0
        %253 = vmatpush1.msra.mxu0 0.0
        %254 = vmatprep.subr.mxu0 0.0
        %255 = vmatpush1.msra.mxu0 0.0
        %256 = vmatprep.subr.mxu0 0.0
        %257 = vmatpush1.msra.mxu0 0.0
        %258 = vmatprep.subr.mxu0 0.0
        %259 = vmatpush1.msra.mxu0 0.0
        %260 = vmatprep.subr.mxu0 0.0
        %261 = vmatpush1.msra.mxu0 0.0
        %262 = vmatprep.subr.mxu0 0.0
        %263 = vmatpush1.msra.mxu0 0.0
        %264 = vmatprep.subr.mxu0 0.0
        %265 = vmatpush1.msra.mxu0 0.0
        %266 = vmatprep.subr.mxu0 0.0
        %267 = vmatpush1.msra.mxu0 0.0
        %268 = vmatprep.subr.mxu0 0.0
        %269 = vmatpush1.msra.mxu0 0.0
        %270 = vmatprep.subr.mxu0 0.0
        %271 = vmatpush1.msra.mxu0 0.0
        %272 = vmatprep.subr.mxu0 0.0
        %273 = vmatpush1.msra.mxu0 0.0
        %274 = vmatprep.subr.mxu0 0.0
        %275 = vmatpush1.msra.mxu0 0.0
        %276 = vmatprep.subr.mxu0 0.0
        %277 = vmatpush1.msra.mxu0 0.0
        %278 = vmatprep.subr.mxu0 0.0
        %279 = vmatpush1.msra.mxu0 0.0
        %280 = vmatprep.mubr.f32.mxu0 0.0
        %281 = vmatmul.mubr.f32.gmra.mrb[0].mxu0 %v206
        %v282 = vpop.f32.mrb[0].mxu0
        %v283 = vadd.f32 0.0, %v282
        %v284 = vpop.f32.mrb[0].mxu0
        %v285 = vadd.f32 0.0, %v284
        %286 = vmatprep.mubr.f32.mxu0 0.0
        %287 = vmatmul.mubr.f32.gmra.mrb[0].mxu0 %v209
        %v288 = vpop.f32.mrb[0].mxu0
        %v289 = vadd.f32 0.0, %v288
        %v290 = vpop.f32.mrb[0].mxu0
        %v291 = vadd.f32 0.0, %v290
        %292 = vdwg.mxu0
        %v293 = vld [vmem:[#allocation2] sm:$0xff]
        %v294 = vld [vmem:[#allocation2 + $0x8] sm:$0xff]
        %297 = vrot.lane.b32.xlu0 %v283, 16
        %v298 = vpop.permute.xlu0 %297
        %299 = vrot.lane.b32.xlu0 %v285, 16
        %v300 = vpop.permute.xlu0 %299
        %vm301 = vcmask 130048
        %v302 = vsel %vm301, %v298, %v300
        %v305 = vadd.f32 %v293, %v298
        %v306 = vadd.f32 %v294, %v302
        %vm307 = vcmask 1047680
        %308 = vst.msk [vmem:[#allocation2] sm:$0xff] %vm307, %v305
        %309 = vst.msk [vmem:[#allocation2 + $0x8] sm:$0xff] %vm198, %v306
        %v310 = vld [vmem:[%s2] sm:$0x3]
        %v311 = vadd.s32 %v310, 4294967294
        %vm312 = vcmp.ge.s32.totalorder %v311, 0
        %vm313 = vcmp.lt.s32.totalorder %v311, 16
        %vm314 = vmand %vm312, %vm313
        %v315 = vsel %vm314, 1, 0
        %v316 = vlaneseq
        %v317 = vshrl.u32 %v316, 7
        %v318 = vsub.s32 0, %v317
        %v319 = vrot.slane %v315, %v318
        %v320 = vlaneseq
        %v321 = vshrl.u32 %v320, 7
        %v322 = vsub.s32 1, %v321
        %v323 = vrot.slane %v315, %v322
        %vm324 = vcmp.eq.s32.totalorder %v319, 1
        %vm325 = vcmp.eq.s32.totalorder %v323, 1
        %328 = vrot.lane.b32.xlu0 %v289, 114
        %v329 = vpop.permute.xlu0 %328
        %330 = vrot.lane.b32.xlu0 %v291, 114
        %v331 = vpop.permute.xlu0 %330
        %vm332 = vcmask 932864
        %v333 = vsel %vm332, %v329, %v331
        %v336 = vsel %vm324, %v333, 0.0
        %v337 = vsel %vm325, %v331, 0.0
        %v338 = vld [vmem:[#allocation2] sm:$0xff]
        %v339 = vld [vmem:[#allocation2 + $0x8] sm:$0xff]
        %v340 = vadd.f32 %v338, %v336
        %v341 = vadd.f32 %v339, %v337
        %342 = vst [vmem:[#allocation2] sm:$0xff] %v340
        %343 = vst.msk [vmem:[#allocation2 + $0x8] sm:$0xff] %vm198, %v341
        %v344 = vld [vmem:[%s1 + $0x10] sm:$0xff]
        %v345 = vld [vmem:[%s1 + $0x18] sm:$0xff]
        %v347 = vsel %vm204, %v344, 0
        %v350 = vsel %vm204, %v345, 0
        %352 = vmatprep.subr.mxu0 %v214
        %353 = vmatpush1.msra.mxu0 %v212
        %354 = vmatprep.subr.mxu0 0.0
        %355 = vmatpush1.msra.mxu0 0.0
        %356 = vmatprep.subr.mxu0 0.0
        %357 = vmatpush1.msra.mxu0 0.0
        %358 = vmatprep.subr.mxu0 0.0
        %359 = vmatpush1.msra.mxu0 0.0
        %360 = vmatprep.subr.mxu0 0.0
        %361 = vmatpush1.msra.mxu0 0.0
        %362 = vmatprep.subr.mxu0 0.0
        %363 = vmatpush1.msra.mxu0 0.0
        %364 = vmatprep.subr.mxu0 0.0
        %365 = vmatpush1.msra.mxu0 0.0
        %366 = vmatprep.subr.mxu0 0.0
        %367 = vmatpush1.msra.mxu0 0.0
        %368 = vmatprep.subr.mxu0 0.0
        %369 = vmatpush1.msra.mxu0 0.0
        %370 = vmatprep.subr.mxu0 0.0
        %371 = vmatpush1.msra.mxu0 0.0
        %372 = vmatprep.subr.mxu0 0.0
        %373 = vmatpush1.msra.mxu0 0.0
        %374 = vmatprep.subr.mxu0 0.0
        %375 = vmatpush1.msra.mxu0 0.0
        %376 = vmatprep.subr.mxu0 0.0
        %377 = vmatpush1.msra.mxu0 0.0
        %378 = vmatprep.subr.mxu0 0.0
        %379 = vmatpush1.msra.mxu0 0.0
        %380 = vmatprep.subr.mxu0 0.0
        %381 = vmatpush1.msra.mxu0 0.0
        %382 = vmatprep.subr.mxu0 0.0
        %383 = vmatpush1.msra.mxu0 0.0
        %384 = vmatprep.subr.mxu0 0.0
        %385 = vmatpush1.msra.mxu0 0.0
        %386 = vmatprep.subr.mxu0 0.0
        %387 = vmatpush1.msra.mxu0 0.0
        %388 = vmatprep.subr.mxu0 0.0
        %389 = vmatpush1.msra.mxu0 0.0
        %390 = vmatprep.subr.mxu0 0.0
        %391 = vmatpush1.msra.mxu0 0.0
        %392 = vmatprep.subr.mxu0 0.0
        %393 = vmatpush1.msra.mxu0 0.0
        %394 = vmatprep.subr.mxu0 0.0
        %395 = vmatpush1.msra.mxu0 0.0
        %396 = vmatprep.subr.mxu0 0.0
        %397 = vmatpush1.msra.mxu0 0.0
        %398 = vmatprep.subr.mxu0 0.0
        %399 = vmatpush1.msra.mxu0 0.0
        %400 = vmatprep.subr.mxu0 0.0
        %401 = vmatpush1.msra.mxu0 0.0
        %402 = vmatprep.subr.mxu0 0.0
        %403 = vmatpush1.msra.mxu0 0.0
        %404 = vmatprep.subr.mxu0 0.0
        %405 = vmatpush1.msra.mxu0 0.0
        %406 = vmatprep.subr.mxu0 0.0
        %407 = vmatpush1.msra.mxu0 0.0
        %408 = vmatprep.subr.mxu0 0.0
        %409 = vmatpush1.msra.mxu0 0.0
        %410 = vmatprep.subr.mxu0 0.0
        %411 = vmatpush1.msra.mxu0 0.0
        %412 = vmatprep.subr.mxu0 0.0
        %413 = vmatpush1.msra.mxu0 0.0
        %414 = vmatprep.subr.mxu0 0.0
        %415 = vmatpush1.msra.mxu0 0.0
        %416 = vmatprep.mubr.f32.mxu0 0.0
        %417 = vmatmul.mubr.f32.gmra.mrb[0].mxu0 %v347
        %v418 = vpop.f32.mrb[0].mxu0
        %v419 = vadd.f32 0.0, %v418
        %v420 = vpop.f32.mrb[0].mxu0
        %v421 = vadd.f32 0.0, %v420
        %422 = vmatprep.mubr.f32.mxu0 0.0
        %423 = vmatmul.mubr.f32.gmra.mrb[0].mxu0 %v350
        %v424 = vpop.f32.mrb[0].mxu0
        %v425 = vadd.f32 0.0, %v424
        %v426 = vpop.f32.mrb[0].mxu0
        %v427 = vadd.f32 0.0, %v426
        %428 = vdwg.mxu0
        %v429 = vld [vmem:[#allocation2] sm:$0xff]
        %v430 = vld [vmem:[#allocation2 + $0x8] sm:$0xff]
        %v431 = vadd.f32 %v429, %v419
        %v432 = vadd.f32 %v430, %v421
        %433 = vst [vmem:[#allocation2] sm:$0xff] %v431
        %434 = vst.msk [vmem:[#allocation2 + $0x8] sm:$0xff] %vm198, %v432
        %v435 = vld [vmem:[%s2] sm:$0x3]
        %v436 = vadd.s32 %v435, 4294967295
        %vm437 = vcmp.ge.s32.totalorder %v436, 0
        %vm438 = vcmp.lt.s32.totalorder %v436, 16
        %vm439 = vmand %vm437, %vm438
        %v440 = vsel %vm439, 1, 0
        %v441 = vlaneseq
        %v442 = vshrl.u32 %v441, 7
        %v443 = vsub.s32 0, %v442
        %v444 = vrot.slane %v440, %v443
        %v445 = vlaneseq
        %v446 = vshrl.u32 %v445, 7
        %v447 = vsub.s32 1, %v446
        %v448 = vrot.slane %v440, %v447
        %vm449 = vcmp.eq.s32.totalorder %v444, 1
        %vm450 = vcmp.eq.s32.totalorder %v448, 1
        %453 = vrot.lane.b32.xlu0 %v425, 113
        %v454 = vpop.permute.xlu0 %453
        %455 = vrot.lane.b32.xlu0 %v427, 113
        %v456 = vpop.permute.xlu0 %455
        %vm457 = vcmask 924672
        %v458 = vsel %vm457, %v454, %v456
        %v461 = vsel %vm449, %v458, 0.0
        %v462 = vsel %vm450, %v456, 0.0
        %v463 = vld [vmem:[#allocation2] sm:$0xff]
        %v464 = vld [vmem:[#allocation2 + $0x8] sm:$0xff]
        %v465 = vadd.f32 %v463, %v461
        %v466 = vadd.f32 %v464, %v462
        %467 = vst [vmem:[#allocation2] sm:$0xff] %v465
        %468 = vst.msk [vmem:[#allocation2 + $0x8] sm:$0xff] %vm198, %v466
        %v469 = vld [vmem:[%s1 + $0x20] sm:$0xff]
        %v470 = vld [vmem:[%s1 + $0x28] sm:$0xff]
        %v472 = vsel %vm204, %v469, 0
        %v475 = vsel %vm204, %v470, 0
        %477 = vmatprep.subr.mxu0 %v214
        %478 = vmatpush1.msra.mxu0 %v212
        %479 = vmatprep.subr.mxu0 0.0
        %480 = vmatpush1.msra.mxu0 0.0
        %481 = vmatprep.subr.mxu0 0.0
        %482 = vmatpush1.msra.mxu0 0.0
        %483 = vmatprep.subr.mxu0 0.0
        %484 = vmatpush1.msra.mxu0 0.0
        %485 = vmatprep.subr.mxu0 0.0
        %486 = vmatpush1.msra.mxu0 0.0
        %487 = vmatprep.subr.mxu0 0.0
        %488 = vmatpush1.msra.mxu0 0.0
        %489 = vmatprep.subr.mxu0 0.0
        %490 = vmatpush1.msra.mxu0 0.0
        %491 = vmatprep.subr.mxu0 0.0
        %492 = vmatpush1.msra.mxu0 0.0
        %493 = vmatprep.subr.mxu0 0.0
        %494 = vmatpush1.msra.mxu0 0.0
        %495 = vmatprep.subr.mxu0 0.0
        %496 = vmatpush1.msra.mxu0 0.0
        %497 = vmatprep.subr.mxu0 0.0
        %498 = vmatpush1.msra.mxu0 0.0
        %499 = vmatprep.subr.mxu0 0.0
        %500 = vmatpush1.msra.mxu0 0.0
        %501 = vmatprep.subr.mxu0 0.0
        %502 = vmatpush1.msra.mxu0 0.0
        %503 = vmatprep.subr.mxu0 0.0
        %504 = vmatpush1.msra.mxu0 0.0
        %505 = vmatprep.subr.mxu0 0.0
        %506 = vmatpush1.msra.mxu0 0.0
        %507 = vmatprep.subr.mxu0 0.0
        %508 = vmatpush1.msra.mxu0 0.0
        %509 = vmatprep.subr.mxu0 0.0
        %510 = vmatpush1.msra.mxu0 0.0
        %511 = vmatprep.subr.mxu0 0.0
        %512 = vmatpush1.msra.mxu0 0.0
        %513 = vmatprep.subr.mxu0 0.0
        %514 = vmatpush1.msra.mxu0 0.0
        %515 = vmatprep.subr.mxu0 0.0
        %516 = vmatpush1.msra.mxu0 0.0
        %517 = vmatprep.subr.mxu0 0.0
        %518 = vmatpush1.msra.mxu0 0.0
        %519 = vmatprep.subr.mxu0 0.0
        %520 = vmatpush1.msra.mxu0 0.0
        %521 = vmatprep.subr.mxu0 0.0
        %522 = vmatpush1.msra.mxu0 0.0
        %523 = vmatprep.subr.mxu0 0.0
        %524 = vmatpush1.msra.mxu0 0.0
        %525 = vmatprep.subr.mxu0 0.0
        %526 = vmatpush1.msra.mxu0 0.0
        %527 = vmatprep.subr.mxu0 0.0
        %528 = vmatpush1.msra.mxu0 0.0
        %529 = vmatprep.subr.mxu0 0.0
        %530 = vmatpush1.msra.mxu0 0.0
        %531 = vmatprep.subr.mxu0 0.0
        %532 = vmatpush1.msra.mxu0 0.0
        %533 = vmatprep.subr.mxu0 0.0
        %534 = vmatpush1.msra.mxu0 0.0
        %535 = vmatprep.subr.mxu0 0.0
        %536 = vmatpush1.msra.mxu0 0.0
        %537 = vmatprep.subr.mxu0 0.0
        %538 = vmatpush1.msra.mxu0 0.0
        %539 = vmatprep.subr.mxu0 0.0
        %540 = vmatpush1.msra.mxu0 0.0
        %541 = vmatprep.mubr.f32.mxu0 0.0
        %542 = vmatmul.mubr.f32.gmra.mrb[0].mxu0 %v472
        %v543 = vpop.f32.mrb[0].mxu0
        %v544 = vadd.f32 0.0, %v543
        %v545 = vpop.f32.mrb[0].mxu0
        %v546 = vadd.f32 0.0, %v545
        %547 = vmatprep.mubr.f32.mxu0 0.0
        %548 = vmatmul.mubr.f32.gmra.mrb[0].mxu0 %v475
        %v549 = vpop.f32.mrb[0].mxu0
        %v550 = vadd.f32 0.0, %v549
        %v551 = vpop.f32.mrb[0].mxu0
        %v552 = vadd.f32 0.0, %v551
        %553 = vdwg.mxu0
        %v554 = vld [vmem:[#allocation2] sm:$0xff]
        %v555 = vld [vmem:[#allocation2 + $0x8] sm:$0xff]
        %558 = vrot.lane.b32.xlu0 %v544, 112
        %v559 = vpop.permute.xlu0 %558
        %560 = vrot.lane.b32.xlu0 %v546, 112
        %v561 = vpop.permute.xlu0 %560
        %vm562 = vcmask 916480
        %v563 = vsel %vm562, %v559, %v561
        %v566 = vadd.f32 %v554, %v563
        %v567 = vadd.f32 %v555, %v561
        %568 = vst [vmem:[#allocation2] sm:$0xff] %v566
        %569 = vst.msk [vmem:[#allocation2 + $0x8] sm:$0xff] %vm198, %v567
        %v570 = vld [vmem:[#allocation2] sm:$0xff]
        %v571 = vld [vmem:[#allocation2 + $0x8] sm:$0xff]
        %574 = vrot.lane.b32.xlu0 %v550, 112
        %v575 = vpop.permute.xlu0 %574
        %576 = vrot.lane.b32.xlu0 %v552, 112
        %v577 = vpop.permute.xlu0 %576
        %v578 = vsel %vm562, %v575, %v577
        %v581 = vadd.f32 %v570, %v578
        %v582 = vadd.f32 %v571, %v577
        %583 = vst [vmem:[#allocation2] sm:$0xff] %v581
        %584 = vst.msk [vmem:[#allocation2 + $0x8] sm:$0xff] %vm198, %v582
        %v585 = vld [vmem:[%s1 + $0x30] sm:$0xff]
        %v586 = vld [vmem:[%s1 + $0x38] sm:$0xff]
        %v588 = vsel %vm204, %v585, 0
        %v591 = vsel %vm204, %v586, 0
        %593 = vmatprep.subr.mxu0 %v214
        %594 = vmatpush1.msra.mxu0 %v212
        %595 = vmatprep.subr.mxu0 0.0
        %596 = vmatpush1.msra.mxu0 0.0
        %597 = vmatprep.subr.mxu0 0.0
        %598 = vmatpush1.msra.mxu0 0.0
        %599 = vmatprep.subr.mxu0 0.0
        %600 = vmatpush1.msra.mxu0 0.0
        %601 = vmatprep.subr.mxu0 0.0
        %602 = vmatpush1.msra.mxu0 0.0
        %603 = vmatprep.subr.mxu0 0.0
        %604 = vmatpush1.msra.mxu0 0.0
        %605 = vmatprep.subr.mxu0 0.0
        %606 = vmatpush1.msra.mxu0 0.0
        %607 = vmatprep.subr.mxu0 0.0
        %608 = vmatpush1.msra.mxu0 0.0
        %609 = vmatprep.subr.mxu0 0.0
        %610 = vmatpush1.msra.mxu0 0.0
        %611 = vmatprep.subr.mxu0 0.0
        %612 = vmatpush1.msra.mxu0 0.0
        %613 = vmatprep.subr.mxu0 0.0
        %614 = vmatpush1.msra.mxu0 0.0
        %615 = vmatprep.subr.mxu0 0.0
        %616 = vmatpush1.msra.mxu0 0.0
        %617 = vmatprep.subr.mxu0 0.0
        %618 = vmatpush1.msra.mxu0 0.0
        %619 = vmatprep.subr.mxu0 0.0
        %620 = vmatpush1.msra.mxu0 0.0
        %621 = vmatprep.subr.mxu0 0.0
        %622 = vmatpush1.msra.mxu0 0.0
        %623 = vmatprep.subr.mxu0 0.0
        %624 = vmatpush1.msra.mxu0 0.0
        %625 = vmatprep.subr.mxu0 0.0
        %626 = vmatpush1.msra.mxu0 0.0
        %627 = vmatprep.subr.mxu0 0.0
        %628 = vmatpush1.msra.mxu0 0.0
        %629 = vmatprep.subr.mxu0 0.0
        %630 = vmatpush1.msra.mxu0 0.0
        %631 = vmatprep.subr.mxu0 0.0
        %632 = vmatpush1.msra.mxu0 0.0
        %633 = vmatprep.subr.mxu0 0.0
        %634 = vmatpush1.msra.mxu0 0.0
        %635 = vmatprep.subr.mxu0 0.0
        %636 = vmatpush1.msra.mxu0 0.0
        %637 = vmatprep.subr.mxu0 0.0
        %638 = vmatpush1.msra.mxu0 0.0
        %639 = vmatprep.subr.mxu0 0.0
        %640 = vmatpush1.msra.mxu0 0.0
        %641 = vmatprep.subr.mxu0 0.0
        %642 = vmatpush1.msra.mxu0 0.0
        %643 = vmatprep.subr.mxu0 0.0
        %644 = vmatpush1.msra.mxu0 0.0
        %645 = vmatprep.subr.mxu0 0.0
        %646 = vmatpush1.msra.mxu0 0.0
        %647 = vmatprep.subr.mxu0 0.0
        %648 = vmatpush1.msra.mxu0 0.0
        %649 = vmatprep.subr.mxu0 0.0
        %650 = vmatpush1.msra.mxu0 0.0
        %651 = vmatprep.subr.mxu0 0.0
        %652 = vmatpush1.msra.mxu0 0.0
        %653 = vmatprep.subr.mxu0 0.0
        %654 = vmatpush1.msra.mxu0 0.0
        %655 = vmatprep.subr.mxu0 0.0
        %656 = vmatpush1.msra.mxu0 0.0
        %657 = vmatprep.mubr.f32.mxu0 0.0
        %658 = vmatmul.mubr.f32.gmra.mrb[0].mxu0 %v588
        %v659 = vpop.f32.mrb[0].mxu0
        %v660 = vadd.f32 0.0, %v659
        %v661 = vpop.f32.mrb[0].mxu0
        %v662 = vadd.f32 0.0, %v661
        %663 = vmatprep.mubr.f32.mxu0 0.0
        %664 = vmatmul.mubr.f32.gmra.mrb[0].mxu0 %v591
        %v665 = vpop.f32.mrb[0].mxu0
        %v666 = vadd.f32 0.0, %v665
        %v667 = vpop.f32.mrb[0].mxu0
        %v668 = vadd.f32 0.0, %v667
        %669 = vdwg.mxu0
        %v670 = vld [vmem:[#allocation2] sm:$0xff]
        %v671 = vld [vmem:[#allocation2 + $0x8] sm:$0xff]
        %674 = vrot.lane.b32.xlu0 %v660, 96
        %v675 = vpop.permute.xlu0 %674
        %676 = vrot.lane.b32.xlu0 %v662, 96
        %v677 = vpop.permute.xlu0 %676
        %v678 = vsel %vm198, %v675, %v677
        %v681 = vadd.f32 %v670, %v678
        %v682 = vadd.f32 %v671, %v677
        %683 = vst [vmem:[#allocation2] sm:$0xff] %v681
        %684 = vst.msk [vmem:[#allocation2 + $0x8] sm:$0xff] %vm198, %v682
        %v685 = vld [vmem:[%s2] sm:$0x3]
        %v686 = vadd.s32 %v685, 1
        %vm687 = vcmp.ge.s32.totalorder %v686, 0
        %vm688 = vcmp.lt.s32.totalorder %v686, 16
        %vm689 = vmand %vm687, %vm688
        %v690 = vsel %vm689, 1, 0
        %v691 = vlaneseq
        %v692 = vshrl.u32 %v691, 7
        %v693 = vsub.s32 0, %v692
        %v694 = vrot.slane %v690, %v693
        %v695 = vlaneseq
        %v696 = vshrl.u32 %v695, 7
        %v697 = vsub.s32 1, %v696
        %v698 = vrot.slane %v690, %v697
        %vm699 = vcmp.eq.s32.totalorder %v694, 1
        %vm700 = vcmp.eq.s32.totalorder %v698, 1
        %703 = vrot.lane.b32.xlu0 %v666, 111
        %v704 = vpop.permute.xlu0 %703
        %705 = vrot.lane.b32.xlu0 %v668, 111
        %v706 = vpop.permute.xlu0 %705
        %vm707 = vcmask 908288
        %v708 = vsel %vm707, %v704, %v706
        %v711 = vsel %vm699, %v708, 0.0
        %v712 = vsel %vm700, %v706, 0.0
        %v713 = vld [vmem:[#allocation2] sm:$0xff]
        %v714 = vld [vmem:[#allocation2 + $0x8] sm:$0xff]
        %v715 = vadd.f32 %v713, %v711
        %v716 = vadd.f32 %v714, %v712
        %717 = vst [vmem:[#allocation2] sm:$0xff] %v715
        %718 = vst.msk [vmem:[#allocation2 + $0x8] sm:$0xff] %vm198, %v716
        %v719 = vld [vmem:[%s1 + $0x40] sm:$0xff]
        %v720 = vld [vmem:[%s1 + $0x48] sm:$0xff]
        %v722 = vsel %vm204, %v719, 0
        %v725 = vsel %vm204, %v720, 0
        %727 = vmatprep.subr.mxu0 %v214
        %728 = vmatpush1.msra.mxu0 %v212
        %729 = vmatprep.subr.mxu0 0.0
        %730 = vmatpush1.msra.mxu0 0.0
        %731 = vmatprep.subr.mxu0 0.0
        %732 = vmatpush1.msra.mxu0 0.0
        %733 = vmatprep.subr.mxu0 0.0
        %734 = vmatpush1.msra.mxu0 0.0
        %735 = vmatprep.subr.mxu0 0.0
        %736 = vmatpush1.msra.mxu0 0.0
        %737 = vmatprep.subr.mxu0 0.0
        %738 = vmatpush1.msra.mxu0 0.0
        %739 = vmatprep.subr.mxu0 0.0
        %740 = vmatpush1.msra.mxu0 0.0
        %741 = vmatprep.subr.mxu0 0.0
        %742 = vmatpush1.msra.mxu0 0.0
        %743 = vmatprep.subr.mxu0 0.0
        %744 = vmatpush1.msra.mxu0 0.0
        %745 = vmatprep.subr.mxu0 0.0
        %746 = vmatpush1.msra.mxu0 0.0
        %747 = vmatprep.subr.mxu0 0.0
        %748 = vmatpush1.msra.mxu0 0.0
        %749 = vmatprep.subr.mxu0 0.0
        %750 = vmatpush1.msra.mxu0 0.0
        %751 = vmatprep.subr.mxu0 0.0
        %752 = vmatpush1.msra.mxu0 0.0
        %753 = vmatprep.subr.mxu0 0.0
        %754 = vmatpush1.msra.mxu0 0.0
        %755 = vmatprep.subr.mxu0 0.0
        %756 = vmatpush1.msra.mxu0 0.0
        %757 = vmatprep.subr.mxu0 0.0
        %758 = vmatpush1.msra.mxu0 0.0
        %759 = vmatprep.subr.mxu0 0.0
        %760 = vmatpush1.msra.mxu0 0.0
        %761 = vmatprep.subr.mxu0 0.0
        %762 = vmatpush1.msra.mxu0 0.0
        %763 = vmatprep.subr.mxu0 0.0
        %764 = vmatpush1.msra.mxu0 0.0
        %765 = vmatprep.subr.mxu0 0.0
        %766 = vmatpush1.msra.mxu0 0.0
        %767 = vmatprep.subr.mxu0 0.0
        %768 = vmatpush1.msra.mxu0 0.0
        %769 = vmatprep.subr.mxu0 0.0
        %770 = vmatpush1.msra.mxu0 0.0
        %771 = vmatprep.subr.mxu0 0.0
        %772 = vmatpush1.msra.mxu0 0.0
        %773 = vmatprep.subr.mxu0 0.0
        %774 = vmatpush1.msra.mxu0 0.0
        %775 = vmatprep.subr.mxu0 0.0
        %776 = vmatpush1.msra.mxu0 0.0
        %777 = vmatprep.subr.mxu0 0.0
        %778 = vmatpush1.msra.mxu0 0.0
        %779 = vmatprep.subr.mxu0 0.0
        %780 = vmatpush1.msra.mxu0 0.0
        %781 = vmatprep.subr.mxu0 0.0
        %782 = vmatpush1.msra.mxu0 0.0
        %783 = vmatprep.subr.mxu0 0.0
        %784 = vmatpush1.msra.mxu0 0.0
        %785 = vmatprep.subr.mxu0 0.0
        %786 = vmatpush1.msra.mxu0 0.0
        %787 = vmatprep.subr.mxu0 0.0
        %788 = vmatpush1.msra.mxu0 0.0
        %789 = vmatprep.subr.mxu0 0.0
        %790 = vmatpush1.msra.mxu0 0.0
        %791 = vmatprep.mubr.f32.mxu0 0.0
        %792 = vmatmul.mubr.f32.gmra.mrb[0].mxu0 %v722
        %v793 = vpop.f32.mrb[0].mxu0
        %v794 = vadd.f32 0.0, %v793
        %v795 = vpop.f32.mrb[0].mxu0
        %v796 = vadd.f32 0.0, %v795
        %797 = vmatprep.mubr.f32.mxu0 0.0
        %798 = vmatmul.mubr.f32.gmra.mrb[0].mxu0 %v725
        %v799 = vpop.f32.mrb[0].mxu0
        %v800 = vadd.f32 0.0, %v799
        %v801 = vpop.f32.mrb[0].mxu0
        %v802 = vadd.f32 0.0, %v801
        %803 = vdwg.mxu0
        %v804 = vld [vmem:[#allocation2] sm:$0xff]
        %v805 = vld [vmem:[#allocation2 + $0x8] sm:$0xff]
        %808 = vrot.lane.b32.xlu0 %v794, 80
        %v809 = vpop.permute.xlu0 %808
        %810 = vrot.lane.b32.xlu0 %v796, 80
        %v811 = vpop.permute.xlu0 %810
        %vm812 = vcmask 654336
        %v813 = vsel %vm812, %v809, %v811
        %v816 = vadd.f32 %v804, %v813
        %v817 = vadd.f32 %v805, %v811
        %818 = vst [vmem:[#allocation2] sm:$0xff] %v816
        %819 = vst.msk [vmem:[#allocation2 + $0x8] sm:$0xff] %vm812, %v817
        %v820 = vld [vmem:[%s2] sm:$0x3]
        %v821 = vadd.s32 %v820, 2
        %vm822 = vcmp.ge.s32.totalorder %v821, 0
        %vm823 = vcmp.lt.s32.totalorder %v821, 16
        %vm824 = vmand %vm822, %vm823
        %v825 = vsel %vm824, 1, 0
        %v826 = vlaneseq
        %v827 = vshrl.u32 %v826, 7
        %v828 = vsub.s32 0, %v827
        %v829 = vrot.slane %v825, %v828
        %v830 = vlaneseq
        %v831 = vshrl.u32 %v830, 7
        %v832 = vsub.s32 1, %v831
        %v833 = vrot.slane %v825, %v832
        %vm834 = vcmp.eq.s32.totalorder %v829, 1
        %vm835 = vcmp.eq.s32.totalorder %v833, 1
        %838 = vrot.lane.b32.xlu0 %v800, 110
        %v839 = vpop.permute.xlu0 %838
        %840 = vrot.lane.b32.xlu0 %v802, 110
        %v841 = vpop.permute.xlu0 %840
        %vm842 = vcmask 900096
        %v843 = vsel %vm842, %v839, %v841
        %v846 = vsel %vm834, %v843, 0.0
        %v847 = vsel %vm835, %v841, 0.0
        %v848 = vld [vmem:[#allocation2] sm:$0xff]
        %v849 = vld [vmem:[#allocation2 + $0x8] sm:$0xff]
        %v850 = vadd.f32 %v848, %v846
        %v851 = vadd.f32 %v849, %v847
        %852 = vst [vmem:[#allocation2] sm:$0xff] %v850
        %853 = vst.msk [vmem:[#allocation2 + $0x8] sm:$0xff] %vm198, %v851
        %v854 = vld [vmem:[#allocation2] sm:$0xff]
        %v855 = vld [vmem:[%s3] sm:$0xff]
        %857 = vset.pattern.permute.xlu0 0
        %858 = vperm.xlu0 %857, %v855
        %v859 = vpop.permute.xlu0 %858
        %v861 = vadd.f32 %v854, %v859
        %863 = vrot.lane.b32.xlu0 %v861, 127
        %v864 = vpop.permute.xlu0 %863
        %vm866 = vcmask 113664
        %867 = vst.msk [vmem:[%s190] sm:$0xff] %vm866, %v864
        %v868 = vld [vmem:[#allocation2] sm:$0xff]
        %v869 = vld [vmem:[%s3] sm:$0xff]
        %871 = vset.pattern.permute.xlu0 0
        %872 = vperm.xlu0 %871, %v869
        %v873 = vpop.permute.xlu0 %872
        %v875 = vadd.f32 %v868, %v873
        %877 = vrot.lane.b32.xlu0 %v875, 125
        %v878 = vpop.permute.xlu0 %877
        %vm880 = vcmask 228464
        %881 = vst.msk [vmem:[%s190] sm:$0xff] %vm880, %v878
        %v882 = vld [vmem:[#allocation2] sm:$0xff]
        %v883 = vld [vmem:[%s3] sm:$0xff]
        %885 = vset.pattern.permute.xlu0 0
        %886 = vperm.xlu0 %885, %v883
        %v887 = vpop.permute.xlu0 %886
        %v889 = vadd.f32 %v882, %v887
        %891 = vrot.lane.b32.xlu0 %v889, 123
        %v892 = vpop.permute.xlu0 %891
        %vm894 = vcmask 343264
        %895 = vst.msk [vmem:[%s190] sm:$0xff] %vm894, %v892
        %v896 = vld [vmem:[#allocation2] sm:$0xff]
        %v897 = vld [vmem:[%s3] sm:$0xff]
        %899 = vset.pattern.permute.xlu0 0
        %900 = vperm.xlu0 %899, %v897
        %v901 = vpop.permute.xlu0 %900
        %v903 = vadd.f32 %v896, %v901
        %905 = vrot.lane.b32.xlu0 %v903, 121
        %v906 = vpop.permute.xlu0 %905
        %vm908 = vcmask 458064
        %909 = vst.msk [vmem:[%s190] sm:$0xff] %vm908, %v906
        %v910 = vld [vmem:[#allocation2] sm:$0xff]
        %v911 = vld [vmem:[%s3] sm:$0xff]
        %913 = vset.pattern.permute.xlu0 0
        %914 = vperm.xlu0 %913, %v911
        %v915 = vpop.permute.xlu0 %914
        %v917 = vadd.f32 %v910, %v915
        %919 = vrot.lane.b32.xlu0 %v917, 119
        %v920 = vpop.permute.xlu0 %919
        %vm922 = vcmask 572864
        %923 = vst.msk [vmem:[%s190] sm:$0xff] %vm922, %v920
        %v924 = vld [vmem:[#allocation2] sm:$0xff]
        %v925 = vld [vmem:[%s3] sm:$0xff]
        %927 = vset.pattern.permute.xlu0 0
        %928 = vperm.xlu0 %927, %v925
        %v929 = vpop.permute.xlu0 %928
        %v931 = vadd.f32 %v924, %v929
        %933 = vrot.lane.b32.xlu0 %v931, 117
        %v934 = vpop.permute.xlu0 %933
        %vm936 = vcmask 687664
        %937 = vst.msk [vmem:[%s190] sm:$0xff] %vm936, %v934
        %v938 = vld [vmem:[#allocation2] sm:$0xff]
        %v939 = vld [vmem:[%s3] sm:$0xff]
        %941 = vset.pattern.permute.xlu0 0
        %942 = vperm.xlu0 %941, %v939
        %v943 = vpop.permute.xlu0 %942
        %v945 = vadd.f32 %v938, %v943
        %947 = vrot.lane.b32.xlu0 %v945, 115
        %v948 = vpop.permute.xlu0 %947
        %vm950 = vcmask 802464
        %951 = vst.msk [vmem:[%s190] sm:$0xff] %vm950, %v948
        %v952 = vld [vmem:[#allocation2] sm:$0xff]
        %v953 = vld [vmem:[%s3] sm:$0xff]
        %955 = vset.pattern.permute.xlu0 0
        %956 = vperm.xlu0 %955, %v953
        %v957 = vpop.permute.xlu0 %956
        %v959 = vadd.f32 %v952, %v957
        %961 = vrot.lane.b32.xlu0 %v959, 113
        %v962 = vpop.permute.xlu0 %961
        %vm964 = vcmask 917264
        %965 = vst.msk [vmem:[%s190] sm:$0xff] %vm964, %v962
        %v966 = vld [vmem:[#allocation2 + $0x8] sm:$0xff]
        %v967 = vld [vmem:[%s3] sm:$0xff]
        %969 = vset.pattern.permute.xlu0 0
        %970 = vperm.xlu0 %969, %v967
        %v971 = vpop.permute.xlu0 %970
        %v973 = vadd.f32 %v966, %v971
        %975 = vrot.lane.b32.xlu0 %v973, 111
        %v976 = vpop.permute.xlu0 %975
        %vm978 = vcmask 1032064
        %979 = vst.msk [vmem:[%s190] sm:$0xff] %vm978, %v976
        %v980 = vld [vmem:[#allocation2 + $0x8] sm:$0xff]
        %v981 = vld [vmem:[%s3] sm:$0xff]
        %983 = vset.pattern.permute.xlu0 0
        %984 = vperm.xlu0 %983, %v981
        %v985 = vpop.permute.xlu0 %984
        %v987 = vadd.f32 %v980, %v985
        %989 = vrot.lane.b32.xlu0 %v987, 109
        %v990 = vpop.permute.xlu0 %989
        %vm992 = vcmask 1048560
        %993 = vst.msk [vmem:[%s190] sm:$0xff] %vm992, %v990
        %vm994 = vcmask 97280
        %995 = vst.msk [vmem:[%s190 + $0x8] sm:$0xff] %vm994, %v990
        %v996 = vld [vmem:[#allocation2 + $0x8] sm:$0xff]
        %v997 = vld [vmem:[%s3] sm:$0xff]
        %999 = vset.pattern.permute.xlu0 0
        %1000 = vperm.xlu0 %999, %v997
        %v1001 = vpop.permute.xlu0 %1000
        %v1003 = vadd.f32 %v996, %v1001
        %1005 = vrot.lane.b32.xlu0 %v1003, 107
        %v1006 = vpop.permute.xlu0 %1005
        %vm1008 = vcmask 212064
        %1009 = vst.msk [vmem:[%s190 + $0x8] sm:$0xff] %vm1008, %v1006
        %v1010 = vld [vmem:[#allocation2 + $0x8] sm:$0xff]
        %v1011 = vld [vmem:[%s3] sm:$0xff]
        %1013 = vset.pattern.permute.xlu0 0
        %1014 = vperm.xlu0 %1013, %v1011
        %v1015 = vpop.permute.xlu0 %1014
        %v1017 = vadd.f32 %v1010, %v1015
        %1019 = vrot.lane.b32.xlu0 %v1017, 105
        %v1020 = vpop.permute.xlu0 %1019
        %vm1022 = vcmask 326864
        %1023 = vst.msk [vmem:[%s190 + $0x8] sm:$0xff] %vm1022, %v1020
        %v1024 = vld [vmem:[#allocation2 + $0x8] sm:$0xff]
        %v1025 = vld [vmem:[%s3] sm:$0xff]
        %1027 = vset.pattern.permute.xlu0 0
        %1028 = vperm.xlu0 %1027, %v1025
        %v1029 = vpop.permute.xlu0 %1028
        %v1031 = vadd.f32 %v1024, %v1029
        %1033 = vrot.lane.b32.xlu0 %v1031, 103
        %v1034 = vpop.permute.xlu0 %1033
        %vm1036 = vcmask 441664
        %1037 = vst.msk [vmem:[%s190 + $0x8] sm:$0xff] %vm1036, %v1034
        %v1038 = vld [vmem:[#allocation2 + $0x8] sm:$0xff]
        %v1039 = vld [vmem:[%s3] sm:$0xff]
        %1041 = vset.pattern.permute.xlu0 0
        %1042 = vperm.xlu0 %1041, %v1039
        %v1043 = vpop.permute.xlu0 %1042
        %v1045 = vadd.f32 %v1038, %v1043
        %1047 = vrot.lane.b32.xlu0 %v1045, 101
        %v1048 = vpop.permute.xlu0 %1047
        %vm1050 = vcmask 556464
        %1051 = vst.msk [vmem:[%s190 + $0x8] sm:$0xff] %vm1050, %v1048
        %s1052 = sand.u32 %s115, 1
        %s1053 = scalar_lea.sflag [#allocation4], %s1052
        %s1054 = sand.u32 %s115, 1
        %s1055 = smul.addr %s1054, 16
        %s1056 = scalar_lea.vmem [#allocation3], %s1055
        // Predicated region
        $region37: #{tpu_custom_call.1} parent=35 // pred_check
          %p1057 = pneg %p125
        $region38: #{tpu_custom_call.1} parent=35 // pred_check_branch
          %1059 = sbr.rel (%p1057) target = $region40
        $region39: #{tpu_custom_call.1} parent=35 // pred_region
          %s1061 = ssub.s32 256, 256
          %1062 = vsyncadd %s1053, %s1061
          %s1063 = smul.addr %s18, 2
          %s1064 = smul.addr %s1063, 128
          %s1065 = scalar_lea.hbm %s4, %s1064
          %s1067 = sshll.u32 %s1056, 4
          %s1068 = int_to_ptr.vmem [resolvable:$true] %s1067
          %1070 = dma.vmem_to_hbm [thread:$0]  %s1068, 256, %s1065, %s1053
        $region40: #{tpu_custom_call.1} parent=35 // pred_fallthru
          _
      $region36: #{tpu_custom_call.1} parent=5 // pred_fallthru
        _
      %p1071 = scmp.le.s32.totalorder 2, %s13
      // Predicated region
      $region41: #{tpu_custom_call.1} parent=5 // pred_check
        %p1072 = pneg %p1071
      $region42: #{tpu_custom_call.1} parent=5 // pred_check_branch
        %1074 = sbr.rel (%p1072) target = $region44
      $region43: #{tpu_custom_call.1} parent=5 // pred_region
        %s1075 = ssub.s32 %s13, 2
        // Predicated region
        $region45: #{tpu_custom_call.1} parent=43 // pred_check
          %p1076 = pneg %p131
        $region46: #{tpu_custom_call.1} parent=43 // pred_check_branch
          %1078 = sbr.rel (%p1076) target = $region48
        $region47: #{tpu_custom_call.1} parent=43 // pred_region
          %s1079 = sand.u32 %s116, 1
          %s1080 = scalar_lea.sflag [#allocation4], %s1079
          %s1081 = sand.u32 %s116, 1
          %s1082 = smul.addr %s1081, 16
          %s1083 = scalar_lea.vmem [#allocation3], %s1082
          %1084 = dma.done %s1080, 256
        $region48: #{tpu_custom_call.1} parent=43 // pred_fallthru
          _
      $region44: #{tpu_custom_call.1} parent=5 // pred_fallthru
        _
    $region6: #{tpu_custom_call.1} parent=1 // loop_footer
      %s17 = sadd.s32 1, %s13
    $region7: #{tpu_custom_call.1} parent=1 // loop_footer_branch
      %12 = sbr.rel target = $region3
    $region8: #{tpu_custom_call.1} parent=1 // loop_exit
      _
    %1085 = vsyncpa [#allocation4], 1
    %s1086 = scalar_lea.sflag [#allocation4], 1
    %1087 = vsyncpa %s1086, 1

</llo_original>
